<compile_context>
chip_gen: v7x
topology: tpu7x:2x2x1
jax: 0.10.0
libtpu: 0.0.40
codegen_flags: <defaults>
</compile_context>

<pallas_src>
import jax
import jax.numpy as jnp
from jax.experimental import pallas as pl
from jax.experimental.pallas import tpu as pltpu

FC_HIDDEN = 128
OUT_DIM = 1
OUT_PAD = 128          # lane-dense output width inside the kernel
TILE_B = 8             # batch rows per grid step (multiple of 8 sublanes)


def siamese_head_kernel(ref_h, ref_m, ref_d, a_h, a_m, a_d, b_h, b_m, b_d,
                        w1_ref, b1_ref, w2_ref, b2_ref, out_ref,
                        acc_r, acc_a, acc_b):
    s = pl.program_id(1)

    @pl.when(s == 0)
    def _():
        acc_r[...] = jnp.zeros_like(acc_r)
        acc_a[...] = jnp.zeros_like(acc_a)
        acc_b[...] = jnp.zeros_like(acc_b)

    def accumulate(h_ref, m_ref, acc):
        # In-kernel, per-tile cast to bf16 for the MXU (no extra HBM traffic;
        # accumulation stays f32 via preferred_element_type).
        tok = h_ref[...].astype(jnp.bfloat16)       # (TB, S_TILE, H)
        mask = m_ref[...].astype(jnp.bfloat16)      # (TB, 1, S_TILE), exact 0/1
        # masked partial sum over this S tile on the MXU:
        # per-batch (1, S_TILE) @ (S_TILE, H) -> (1, H)
        part = jnp.einsum("bqs,bsh->bqh", mask, tok,
                          preferred_element_type=jnp.float32)
        acc[...] += part[:, 0, :]                   # (TB, H) f32

    accumulate(ref_h, ref_m, acc_r)
    accumulate(a_h, a_m, acc_a)
    accumulate(b_h, b_m, acc_b)

    @pl.when(s == pl.num_programs(1) - 1)
    def _():
        Hd = acc_r.shape[-1]
        # mean pooling: divide by the precomputed (clamped) valid-token count
        e_r = acc_r[...] / ref_d[...]               # (TB, H) / (TB, 1)
        e_a = acc_a[...] / a_d[...]
        e_b = acc_b[...] / b_d[...]
        # concat([e_r, e_a, e_b], 1) @ W1 == sum of per-segment matmuls;
        # weights are streamed from VMEM via ref slices (no full-value load).
        h1 = (jnp.dot(e_r, w1_ref[0:Hd, :], preferred_element_type=jnp.float32)
              + jnp.dot(e_a, w1_ref[Hd:2 * Hd, :],
                        preferred_element_type=jnp.float32)
              + jnp.dot(e_b, w1_ref[2 * Hd:3 * Hd, :],
                        preferred_element_type=jnp.float32)
              + b1_ref[...])                        # (TB, 128)
        h1 = jnp.maximum(h1, 0.0)                   # ReLU
        # lane-dense (TB, 128) store; real output is column 0 (sliced outside)
        out_ref[...] = (jnp.dot(h1, w2_ref[...],
                                preferred_element_type=jnp.float32)
                        + b2_ref[...])


def _choose_s_tile(S):
    # lane-friendly S tile: multiples of 128 when possible, else the full S
    for cand in (256, 128):
        if S % cand == 0:
            return cand
    return S


def _derive_vmem_limit(tile_b, s_tile, H, out_pad):
    f32 = 4
    hid = 3 * 2 * tile_b * s_tile * H * f32                 # double-buffered hidden tiles
    msk = 3 * 2 * tile_b * max(s_tile, 128) * f32           # masks (lane-padded)
    den = 3 * 2 * tile_b * 128 * f32                        # denominators (lane-padded)
    wts = 2 * (3 * H * FC_HIDDEN + FC_HIDDEN
               + FC_HIDDEN * out_pad + out_pad) * f32        # weights (double-buffered)
    out = 2 * tile_b * out_pad * f32                        # output tile
    acc = 3 * tile_b * max(H, 128) * f32                    # accumulator scratch
    est = hid + msk + den + wts + out + acc
    # 30% headroom for compiler-internal scratch; clamp to a range that is
    # safe on v5e / v6e / v7x (64 MiB is v7x's physical VMEM).
    return int(min(max(est * 1.3, 32 * 1024 * 1024), 64 * 1024 * 1024))


def siamese_head(ref_h, ref_mask, a_h, a_mask, b_h, b_mask, params,
                 *, tile_b=None, s_tile=None):
    """ref_h/a_h/b_h: (B,S,H) f32 hidden states; *_mask: (B,S) {0,1} floats."""
    w1, b1, w2, b2 = params
    B, S, H = ref_h.shape

    if tile_b is None:
        tile_b = TILE_B if B % TILE_B == 0 else B
    assert B % tile_b == 0, "batch must be a multiple of tile_b"
    if s_tile is None:
        s_tile = _choose_s_tile(S)
    assert S % s_tile == 0, "seq length must be a multiple of s_tile"

    # TODO(synk): if the transformer backbone is jitted together with this head
    # and already emits bf16 hidden states, feed those directly (skip the
    # in-kernel cast); here we assume standalone f32 HBM inputs.
    def prep_m(m):   # (B,S) -> (B,1,S) f32 {0,1}
        return m.astype(jnp.float32)[:, None, :]

    def prep_d(m):   # (B,1) f32 clamped valid-token count (exact, stays f32)
        return jnp.maximum(m.astype(jnp.float32).sum(axis=1, keepdims=True),
                           1e-9)

    # pad the last layer to a lane-dense width; zeros don't change column 0
    w2p = jnp.zeros((FC_HIDDEN, OUT_PAD), jnp.float32).at[:, :OUT_DIM].set(w2)
    b2p = jnp.zeros((1, OUT_PAD), jnp.float32).at[:, :OUT_DIM].set(b2)

    hid_map = lambda i, s: (i, s, 0)     # batch-tiled, S-tiled hidden states
    msk_map = lambda i, s: (i, 0, s)     # batch-tiled, S-tiled masks
    den_map = lambda i, s: (i, 0)        # batch-tiled denominators
    wgt_map = lambda i, s: (0, 0)        # whole-array weights (never re-fetched)

    in_specs = [
        pl.BlockSpec((tile_b, s_tile, H), hid_map),   # ref hidden
        pl.BlockSpec((tile_b, 1, s_tile), msk_map),   # ref mask
        pl.BlockSpec((tile_b, 1), den_map),           # ref denom
        pl.BlockSpec((tile_b, s_tile, H), hid_map),   # hyp_a hidden
        pl.BlockSpec((tile_b, 1, s_tile), msk_map),   # hyp_a mask
        pl.BlockSpec((tile_b, 1), den_map),           # hyp_a denom
        pl.BlockSpec((tile_b, s_tile, H), hid_map),   # hyp_b hidden
        pl.BlockSpec((tile_b, 1, s_tile), msk_map),   # hyp_b mask
        pl.BlockSpec((tile_b, 1), den_map),           # hyp_b denom
        pl.BlockSpec((3 * H, FC_HIDDEN), wgt_map),
        pl.BlockSpec((1, FC_HIDDEN), wgt_map),
        pl.BlockSpec((FC_HIDDEN, OUT_PAD), wgt_map),
        pl.BlockSpec((1, OUT_PAD), wgt_map),
    ]
    # output block index is constant across the S (reduction) axis ->
    # resident accumulator, written only at the last S step.
    out_spec = pl.BlockSpec((tile_b, OUT_PAD), lambda i, s: (i, 0))

    out_padded = pl.pallas_call(
        siamese_head_kernel,
        out_shape=jax.ShapeDtypeStruct((B, OUT_PAD), jnp.float32),
        grid_spec=pltpu.PrefetchScalarGridSpec(
            num_scalar_prefetch=0,
            grid=(B // tile_b, S // s_tile),
            in_specs=in_specs,
            out_specs=out_spec,
            scratch_shapes=[pltpu.VMEM((tile_b, H), jnp.float32),
                            pltpu.VMEM((tile_b, H), jnp.float32),
                            pltpu.VMEM((tile_b, H), jnp.float32)],
        ),
        compiler_params=pltpu.CompilerParams(
            dimension_semantics=("parallel", "arbitrary"),
            vmem_limit_bytes=_derive_vmem_limit(tile_b, s_tile, H, OUT_PAD),
        ),
    )(ref_h, prep_m(ref_mask), prep_d(ref_mask),
      a_h, prep_m(a_mask), prep_d(a_mask),
      b_h, prep_m(b_mask), prep_d(b_mask),
      w1, b1, w2p, b2p)

    return out_padded[:, :OUT_DIM]


def reference_head(ref_h, ref_mask, a_h, a_mask, b_h, b_mask, params):
    """Pure-JAX reference for the fc head.  Hidden states are rounded to bf16
    to mirror the kernel's in-tile MXU-input cast (accumulation stays f32)."""
    w1, b1, w2, b2 = params

    def mean_pool(h, m):
        h = h.astype(jnp.bfloat16).astype(jnp.float32)
        me = jnp.broadcast_to(m[:, :, None].astype(jnp.float32), h.shape)
        return jnp.sum(h * me, axis=1) / jnp.maximum(jnp.sum(me, axis=1), 1e-9)

    cat = jnp.concatenate(
        [mean_pool(ref_h, ref_mask), mean_pool(a_h, a_mask),
         mean_pool(b_h, b_mask)], axis=1)
    h1 = jnp.maximum(cat @ w1 + b1, 0.0)
    return h1 @ w2 + b2


def _prefix_mask(key, batch, seq):
    lens = jax.random.randint(key, (batch,), 1, seq + 1)
    return (jnp.arange(seq)[None, :] < lens[:, None]).astype(jnp.float32)


if __name__ == "__main__":
    key = jax.random.PRNGKey(0)
    ks = jax.random.split(key, 10)

    B, S, H = 16, 8, 32   # small synthetic shapes; grid = (2, 1)

    # synthetic "transformer last_hidden_state" for ref / hyp_a / hyp_b
    ref_h = jax.random.normal(ks[0], (B, S, H), dtype=jnp.float32)
    a_h = jax.random.normal(ks[1], (B, S, H), dtype=jnp.float32)
    b_h = jax.random.normal(ks[2], (B, S, H), dtype=jnp.float32)

    # attention masks with ragged valid lengths (padding => 0)
    ref_mask = _prefix_mask(ks[3], B, S)
    a_mask = _prefix_mask(ks[4], B, S)
    b_mask = _prefix_mask(ks[5], B, S)

    # deterministic fc parameters: Linear(3H,128) -> ReLU -> Linear(128,1)
    w1 = 0.05 * jax.random.normal(ks[6], (3 * H, FC_HIDDEN), dtype=jnp.float32)
    b1 = 0.01 * jax.random.normal(ks[7], (1, FC_HIDDEN), dtype=jnp.float32)
    w2 = 0.05 * jax.random.normal(ks[8], (FC_HIDDEN, OUT_DIM), dtype=jnp.float32)
    b2 = 0.01 * jax.random.normal(ks[9], (1, OUT_DIM), dtype=jnp.float32)
    params = (w1, b1, w2, b2)

    out = siamese_head(ref_h, ref_mask, a_h, a_mask, b_h, b_mask, params)
    out = jax.block_until_ready(out)

    ref_out = reference_head(ref_h, ref_mask, a_h, a_mask, b_h, b_mask, params)
    assert out.shape == (B, OUT_DIM)
    assert jnp.allclose(out, ref_out, atol=1e-4, rtol=1e-4)

    print("KERNEL_OK")
</pallas_src>

<mosaic_0001>
module attributes {stable_mosaic.version = 11 : i64} {
  func.func @siamese_head_kernel(%arg0: i32, %arg1: i32, %arg2: memref<8x8x32xf32, #tpu.memory_space<vmem>>, %arg3: memref<8x1x8xf32, #tpu.memory_space<vmem>>, %arg4: memref<8x1xf32, #tpu.memory_space<vmem>>, %arg5: memref<8x8x32xf32, #tpu.memory_space<vmem>>, %arg6: memref<8x1x8xf32, #tpu.memory_space<vmem>>, %arg7: memref<8x1xf32, #tpu.memory_space<vmem>>, %arg8: memref<8x8x32xf32, #tpu.memory_space<vmem>>, %arg9: memref<8x1x8xf32, #tpu.memory_space<vmem>>, %arg10: memref<8x1xf32, #tpu.memory_space<vmem>>, %arg11: memref<96x128xf32, #tpu.memory_space<vmem>>, %arg12: memref<1x128xf32, #tpu.memory_space<vmem>>, %arg13: memref<128x128xf32, #tpu.memory_space<vmem>>, %arg14: memref<1x128xf32, #tpu.memory_space<vmem>>, %arg15: memref<8x128xf32, #tpu.memory_space<vmem>>, %arg16: memref<8x32xf32, #tpu.memory_space<vmem>>, %arg17: memref<8x32xf32, #tpu.memory_space<vmem>>, %arg18: memref<8x32xf32, #tpu.memory_space<vmem>>) attributes {dimension_semantics = [#tpu.dimension_semantics<parallel>, #tpu.dimension_semantics<arbitrary>], iteration_bounds = array<i64: 2, 1>, scalar_prefetch = 0 : i64, scratch_operands = 3 : i64, tpu.core_type = #tpu.core_type<tc>, window_params = [{transform_indices = @transform_0, window_bounds = array<i64: 8, 8, 32>}, {transform_indices = @transform_1, window_bounds = array<i64: 8, 1, 8>}, {transform_indices = @transform_2, window_bounds = array<i64: 8, 1>}, {transform_indices = @transform_3, window_bounds = array<i64: 8, 8, 32>}, {transform_indices = @transform_4, window_bounds = array<i64: 8, 1, 8>}, {transform_indices = @transform_5, window_bounds = array<i64: 8, 1>}, {transform_indices = @transform_6, window_bounds = array<i64: 8, 8, 32>}, {transform_indices = @transform_7, window_bounds = array<i64: 8, 1, 8>}, {transform_indices = @transform_8, window_bounds = array<i64: 8, 1>}, {pipeline_mode = #tpu.pipeline_mode<synchronous>, transform_indices = @transform_9, window_bounds = array<i64: 96, 128>}, {pipeline_mode = #tpu.pipeline_mode<synchronous>, transform_indices = @transform_10, window_bounds = array<i64: 1, 128>}, {pipeline_mode = #tpu.pipeline_mode<synchronous>, transform_indices = @transform_11, window_bounds = array<i64: 128, 128>}, {pipeline_mode = #tpu.pipeline_mode<synchronous>, transform_indices = @transform_12, window_bounds = array<i64: 1, 128>}, {transform_indices = @transform_13, window_bounds = array<i64: 8, 128>}]} {
    %c0_i32 = arith.constant 0 : i32
    %0 = arith.cmpi eq, %arg1, %c0_i32 : i32
    %1 = arith.extui %0 : i1 to i32
    %c0_i32_0 = arith.constant 0 : i32
    %2 = arith.cmpi ne, %1, %c0_i32_0 : i32
    scf.if %2 {
      %cst_34 = arith.constant 0.000000e+00 : f32
      %33 = vector.broadcast %cst_34 : f32 to vector<8x32xf32>
      %c0_35 = arith.constant 0 : index
      %c0_36 = arith.constant 0 : index
      %34 = vector.load %arg16[%c0_35, %c0_36] : memref<8x32xf32, #tpu.memory_space<vmem>>, vector<8x32xf32>
      tpu.vector_store %arg16[%c0_35, %c0_36], %33 {strides = array<i32>} : memref<8x32xf32, #tpu.memory_space<vmem>>, vector<8x32xf32>,
      %cst_37 = arith.constant 0.000000e+00 : f32
      %35 = vector.broadcast %cst_37 : f32 to vector<8x32xf32>
      %c0_38 = arith.constant 0 : index
      %c0_39 = arith.constant 0 : index
      %36 = vector.load %arg17[%c0_38, %c0_39] : memref<8x32xf32, #tpu.memory_space<vmem>>, vector<8x32xf32>
      tpu.vector_store %arg17[%c0_38, %c0_39], %35 {strides = array<i32>} : memref<8x32xf32, #tpu.memory_space<vmem>>, vector<8x32xf32>,
      %cst_40 = arith.constant 0.000000e+00 : f32
      %37 = vector.broadcast %cst_40 : f32 to vector<8x32xf32>
      %c0_41 = arith.constant 0 : index
      %c0_42 = arith.constant 0 : index
      %38 = vector.load %arg18[%c0_41, %c0_42] : memref<8x32xf32, #tpu.memory_space<vmem>>, vector<8x32xf32>
      tpu.vector_store %arg18[%c0_41, %c0_42], %37 {strides = array<i32>} : memref<8x32xf32, #tpu.memory_space<vmem>>, vector<8x32xf32>,
    } else {
    }
    %c0 = arith.constant 0 : index
    %c0_1 = arith.constant 0 : index
    %c0_2 = arith.constant 0 : index
    %3 = vector.load %arg2[%c0, %c0_1, %c0_2] : memref<8x8x32xf32, #tpu.memory_space<vmem>>, vector<8x8x32xf32>
    %4 = arith.truncf %3 : vector<8x8x32xf32> to vector<8x8x32xbf16>
    %c0_3 = arith.constant 0 : index
    %c0_4 = arith.constant 0 : index
    %c0_5 = arith.constant 0 : index
    %5 = vector.load %arg3[%c0_3, %c0_4, %c0_5] : memref<8x1x8xf32, #tpu.memory_space<vmem>>, vector<8x1x8xf32>
    %6 = arith.truncf %5 : vector<8x1x8xf32> to vector<8x1x8xbf16>
    "tpu.trace_start"() <{level = 10 : i32, message = "bqs,bsh->bqh"}> : () -> ()
    %cst = arith.constant dense<0.000000e+00> : vector<8x1x32xf32>
    %7 = tpu.matmul %6, %4, %cst {dimension_numbers = #tpu.dot_dimension_numbers<[2], [1], [1], [2], [0, 0, 0, 1, 1, 2], [0], [0]>} : vector<8x1x8xbf16>, vector<8x8x32xbf16>, vector<8x1x32xf32> -> vector<8x1x32xf32>
    "tpu.trace_stop"() : () -> ()
    %c0_6 = arith.constant 0 : index
    %c0_7 = arith.constant 0 : index
    %8 = vector.load %arg16[%c0_6, %c0_7] : memref<8x32xf32, #tpu.memory_space<vmem>>, vector<8x32xf32>
    %9 = vector.shape_cast %7 : vector<8x1x32xf32> to vector<8x32xf32>
    %10 = arith.addf %8, %9 : vector<8x32xf32>
    %c0_8 = arith.constant 0 : index
    %c0_9 = arith.constant 0 : index
    %11 = vector.load %arg16[%c0_8, %c0_9] : memref<8x32xf32, #tpu.memory_space<vmem>>, vector<8x32xf32>
    tpu.vector_store %arg16[%c0_8, %c0_9], %10 {strides = array<i32>} : memref<8x32xf32, #tpu.memory_space<vmem>>, vector<8x32xf32>,
    %c0_10 = arith.constant 0 : index
    %c0_11 = arith.constant 0 : index
    %c0_12 = arith.constant 0 : index
    %12 = vector.load %arg5[%c0_10, %c0_11, %c0_12] : memref<8x8x32xf32, #tpu.memory_space<vmem>>, vector<8x8x32xf32>
    %13 = arith.truncf %12 : vector<8x8x32xf32> to vector<8x8x32xbf16>
    %c0_13 = arith.constant 0 : index
    %c0_14 = arith.constant 0 : index
    %c0_15 = arith.constant 0 : index
    %14 = vector.load %arg6[%c0_13, %c0_14, %c0_15] : memref<8x1x8xf32, #tpu.memory_space<vmem>>, vector<8x1x8xf32>
    %15 = arith.truncf %14 : vector<8x1x8xf32> to vector<8x1x8xbf16>
    "tpu.trace_start"() <{level = 10 : i32, message = "bqs,bsh->bqh"}> : () -> ()
    %cst_16 = arith.constant dense<0.000000e+00> : vector<8x1x32xf32>
    %16 = tpu.matmul %15, %13, %cst_16 {dimension_numbers = #tpu.dot_dimension_numbers<[2], [1], [1], [2], [0, 0, 0, 1, 1, 2], [0], [0]>} : vector<8x1x8xbf16>, vector<8x8x32xbf16>, vector<8x1x32xf32> -> vector<8x1x32xf32>
    "tpu.trace_stop"() : () -> ()
    %c0_17 = arith.constant 0 : index
    %c0_18 = arith.constant 0 : index
    %17 = vector.load %arg17[%c0_17, %c0_18] : memref<8x32xf32, #tpu.memory_space<vmem>>, vector<8x32xf32>
    %18 = vector.shape_cast %16 : vector<8x1x32xf32> to vector<8x32xf32>
    %19 = arith.addf %17, %18 : vector<8x32xf32>
    %c0_19 = arith.constant 0 : index
    %c0_20 = arith.constant 0 : index
    %20 = vector.load %arg17[%c0_19, %c0_20] : memref<8x32xf32, #tpu.memory_space<vmem>>, vector<8x32xf32>
    tpu.vector_store %arg17[%c0_19, %c0_20], %19 {strides = array<i32>} : memref<8x32xf32, #tpu.memory_space<vmem>>, vector<8x32xf32>,
    %c0_21 = arith.constant 0 : index
    %c0_22 = arith.constant 0 : index
    %c0_23 = arith.constant 0 : index
    %21 = vector.load %arg8[%c0_21, %c0_22, %c0_23] : memref<8x8x32xf32, #tpu.memory_space<vmem>>, vector<8x8x32xf32>
    %22 = arith.truncf %21 : vector<8x8x32xf32> to vector<8x8x32xbf16>
    %c0_24 = arith.constant 0 : index
    %c0_25 = arith.constant 0 : index
    %c0_26 = arith.constant 0 : index
    %23 = vector.load %arg9[%c0_24, %c0_25, %c0_26] : memref<8x1x8xf32, #tpu.memory_space<vmem>>, vector<8x1x8xf32>
    %24 = arith.truncf %23 : vector<8x1x8xf32> to vector<8x1x8xbf16>
    "tpu.trace_start"() <{level = 10 : i32, message = "bqs,bsh->bqh"}> : () -> ()
    %cst_27 = arith.constant dense<0.000000e+00> : vector<8x1x32xf32>
    %25 = tpu.matmul %24, %22, %cst_27 {dimension_numbers = #tpu.dot_dimension_numbers<[2], [1], [1], [2], [0, 0, 0, 1, 1, 2], [0], [0]>} : vector<8x1x8xbf16>, vector<8x8x32xbf16>, vector<8x1x32xf32> -> vector<8x1x32xf32>
    "tpu.trace_stop"() : () -> ()
    %c0_28 = arith.constant 0 : index
    %c0_29 = arith.constant 0 : index
    %26 = vector.load %arg18[%c0_28, %c0_29] : memref<8x32xf32, #tpu.memory_space<vmem>>, vector<8x32xf32>
    %27 = vector.shape_cast %25 : vector<8x1x32xf32> to vector<8x32xf32>
    %28 = arith.addf %26, %27 : vector<8x32xf32>
    %c0_30 = arith.constant 0 : index
    %c0_31 = arith.constant 0 : index
    %29 = vector.load %arg18[%c0_30, %c0_31] : memref<8x32xf32, #tpu.memory_space<vmem>>, vector<8x32xf32>
    tpu.vector_store %arg18[%c0_30, %c0_31], %28 {strides = array<i32>} : memref<8x32xf32, #tpu.memory_space<vmem>>, vector<8x32xf32>,
    %c0_i32_32 = arith.constant 0 : i32
    %30 = arith.cmpi eq, %arg1, %c0_i32_32 : i32
    %31 = arith.extui %30 : i1 to i32
    %c0_i32_33 = arith.constant 0 : i32
    %32 = arith.cmpi ne, %31, %c0_i32_33 : i32
    scf.if %32 {
      %c0_34 = arith.constant 0 : index
      %c0_35 = arith.constant 0 : index
      %33 = vector.load %arg16[%c0_34, %c0_35] : memref<8x32xf32, #tpu.memory_space<vmem>>, vector<8x32xf32>
      %c0_36 = arith.constant 0 : index
      %c0_37 = arith.constant 0 : index
      %34 = vector.load %arg4[%c0_36, %c0_37] : memref<8x1xf32, #tpu.memory_space<vmem>>, vector<8x1xf32>
      %35 = vector.broadcast %34 : vector<8x1xf32> to vector<8x32xf32>
      %36 = arith.divf %33, %35 : vector<8x32xf32>
      %c0_38 = arith.constant 0 : index
      %c0_39 = arith.constant 0 : index
      %37 = vector.load %arg17[%c0_38, %c0_39] : memref<8x32xf32, #tpu.memory_space<vmem>>, vector<8x32xf32>
      %c0_40 = arith.constant 0 : index
      %c0_41 = arith.constant 0 : index
      %38 = vector.load %arg7[%c0_40, %c0_41] : memref<8x1xf32, #tpu.memory_space<vmem>>, vector<8x1xf32>
      %39 = vector.broadcast %38 : vector<8x1xf32> to vector<8x32xf32>
      %40 = arith.divf %37, %39 : vector<8x32xf32>
      %c0_42 = arith.constant 0 : index
      %c0_43 = arith.constant 0 : index
      %41 = vector.load %arg18[%c0_42, %c0_43] : memref<8x32xf32, #tpu.memory_space<vmem>>, vector<8x32xf32>
      %c0_44 = arith.constant 0 : index
      %c0_45 = arith.constant 0 : index
      %42 = vector.load %arg10[%c0_44, %c0_45] : memref<8x1xf32, #tpu.memory_space<vmem>>, vector<8x1xf32>
      %43 = vector.broadcast %42 : vector<8x1xf32> to vector<8x32xf32>
      %44 = arith.divf %41, %43 : vector<8x32xf32>
      %c0_46 = arith.constant 0 : index
      %c0_47 = arith.constant 0 : index
      %45 = vector.load %arg11[%c0_46, %c0_47] : memref<96x128xf32, #tpu.memory_space<vmem>>, vector<32x128xf32>
      %cst_48 = arith.constant dense<0.000000e+00> : vector<8x128xf32>
      %46 = tpu.matmul %36, %45, %cst_48 {dimension_numbers = #tpu.dot_dimension_numbers<[1], [0], [0], [1], [0, 0, 1, 1], [], []>} : vector<8x32xf32>, vector<32x128xf32>, vector<8x128xf32> -> vector<8x128xf32>
      %c32 = arith.constant 32 : index
      %c0_49 = arith.constant 0 : index
      %47 = vector.load %arg11[%c32, %c0_49] : memref<96x128xf32, #tpu.memory_space<vmem>>, vector<32x128xf32>
      %cst_50 = arith.constant dense<0.000000e+00> : vector<8x128xf32>
      %48 = tpu.matmul %40, %47, %cst_50 {dimension_numbers = #tpu.dot_dimension_numbers<[1], [0], [0], [1], [0, 0, 1, 1], [], []>} : vector<8x32xf32>, vector<32x128xf32>, vector<8x128xf32> -> vector<8x128xf32>
      %49 = arith.addf %46, %48 : vector<8x128xf32>
      %c64 = arith.constant 64 : index
      %c0_51 = arith.constant 0 : index
      %50 = vector.load %arg11[%c64, %c0_51] : memref<96x128xf32, #tpu.memory_space<vmem>>, vector<32x128xf32>
      %cst_52 = arith.constant dense<0.000000e+00> : vector<8x128xf32>
      %51 = tpu.matmul %44, %50, %cst_52 {dimension_numbers = #tpu.dot_dimension_numbers<[1], [0], [0], [1], [0, 0, 1, 1], [], []>} : vector<8x32xf32>, vector<32x128xf32>, vector<8x128xf32> -> vector<8x128xf32>
      %52 = arith.addf %49, %51 : vector<8x128xf32>
      %c0_53 = arith.constant 0 : index
      %c0_54 = arith.constant 0 : index
      %53 = vector.load %arg12[%c0_53, %c0_54] : memref<1x128xf32, #tpu.memory_space<vmem>>, vector<1x128xf32>
      %54 = vector.broadcast %53 : vector<1x128xf32> to vector<8x128xf32>
      %55 = arith.addf %52, %54 : vector<8x128xf32>
      %cst_55 = arith.constant 0.000000e+00 : f32
      %56 = vector.broadcast %cst_55 : f32 to vector<8x128xf32>
      %57 = arith.maximumf %55, %56 : vector<8x128xf32>
      %c0_56 = arith.constant 0 : index
      %c0_57 = arith.constant 0 : index
      %58 = vector.load %arg13[%c0_56, %c0_57] : memref<128x128xf32, #tpu.memory_space<vmem>>, vector<128x128xf32>
      %cst_58 = arith.constant dense<0.000000e+00> : vector<8x128xf32>
      %59 = tpu.matmul %57, %58, %cst_58 {dimension_numbers = #tpu.dot_dimension_numbers<[1], [0], [0], [1], [0, 0, 1, 1], [], []>} : vector<8x128xf32>, vector<128x128xf32>, vector<8x128xf32> -> vector<8x128xf32>
      %c0_59 = arith.constant 0 : index
      %c0_60 = arith.constant 0 : index
      %60 = vector.load %arg14[%c0_59, %c0_60] : memref<1x128xf32, #tpu.memory_space<vmem>>, vector<1x128xf32>
      %61 = vector.broadcast %60 : vector<1x128xf32> to vector<8x128xf32>
      %62 = arith.addf %59, %61 : vector<8x128xf32>
      %c0_61 = arith.constant 0 : index
      %c0_62 = arith.constant 0 : index
      %63 = vector.load %arg15[%c0_61, %c0_62] : memref<8x128xf32, #tpu.memory_space<vmem>>, vector<8x128xf32>
      tpu.vector_store %arg15[%c0_61, %c0_62], %62 {strides = array<i32>} : memref<8x128xf32, #tpu.memory_space<vmem>>, vector<8x128xf32>,
    } else {
    }
    return
  }
  func.func @transform_0(%arg0: i32, %arg1: i32) -> (i32, i32, i32) {
    %c0_i32 = arith.constant 0 : i32
    %c0_i32_0 = arith.constant 0 : i32
    return %arg0, %arg1, %c0_i32 : i32, i32, i32
  }
  func.func @transform_1(%arg0: i32, %arg1: i32) -> (i32, i32, i32) {
    %c0_i32 = arith.constant 0 : i32
    %c0_i32_0 = arith.constant 0 : i32
    return %arg0, %c0_i32, %arg1 : i32, i32, i32
  }
  func.func @transform_2(%arg0: i32, %arg1: i32) -> (i32, i32) {
    %c0_i32 = arith.constant 0 : i32
    %c0_i32_0 = arith.constant 0 : i32
    return %arg0, %c0_i32 : i32, i32
  }
  func.func @transform_3(%arg0: i32, %arg1: i32) -> (i32, i32, i32) {
    %c0_i32 = arith.constant 0 : i32
    %c0_i32_0 = arith.constant 0 : i32
    return %arg0, %arg1, %c0_i32 : i32, i32, i32
  }
  func.func @transform_4(%arg0: i32, %arg1: i32) -> (i32, i32, i32) {
    %c0_i32 = arith.constant 0 : i32
    %c0_i32_0 = arith.constant 0 : i32
    return %arg0, %c0_i32, %arg1 : i32, i32, i32
  }
  func.func @transform_5(%arg0: i32, %arg1: i32) -> (i32, i32) {
    %c0_i32 = arith.constant 0 : i32
    %c0_i32_0 = arith.constant 0 : i32
    return %arg0, %c0_i32 : i32, i32
  }
  func.func @transform_6(%arg0: i32, %arg1: i32) -> (i32, i32, i32) {
    %c0_i32 = arith.constant 0 : i32
    %c0_i32_0 = arith.constant 0 : i32
    return %arg0, %arg1, %c0_i32 : i32, i32, i32
  }
  func.func @transform_7(%arg0: i32, %arg1: i32) -> (i32, i32, i32) {
    %c0_i32 = arith.constant 0 : i32
    %c0_i32_0 = arith.constant 0 : i32
    return %arg0, %c0_i32, %arg1 : i32, i32, i32
  }
  func.func @transform_8(%arg0: i32, %arg1: i32) -> (i32, i32) {
    %c0_i32 = arith.constant 0 : i32
    %c0_i32_0 = arith.constant 0 : i32
    return %arg0, %c0_i32 : i32, i32
  }
  func.func @transform_9(%arg0: i32, %arg1: i32) -> (i32, i32) {
    %c0_i32 = arith.constant 0 : i32
    %c0_i32_0 = arith.constant 0 : i32
    %c0_i32_1 = arith.constant 0 : i32
    return %c0_i32, %c0_i32_0 : i32, i32
  }
  func.func @transform_10(%arg0: i32, %arg1: i32) -> (i32, i32) {
    %c0_i32 = arith.constant 0 : i32
    %c0_i32_0 = arith.constant 0 : i32
    %c0_i32_1 = arith.constant 0 : i32
    return %c0_i32, %c0_i32_0 : i32, i32
  }
  func.func @transform_11(%arg0: i32, %arg1: i32) -> (i32, i32) {
    %c0_i32 = arith.constant 0 : i32
    %c0_i32_0 = arith.constant 0 : i32
    %c0_i32_1 = arith.constant 0 : i32
    return %c0_i32, %c0_i32_0 : i32, i32
  }
  func.func @transform_12(%arg0: i32, %arg1: i32) -> (i32, i32) {
    %c0_i32 = arith.constant 0 : i32
    %c0_i32_0 = arith.constant 0 : i32
    %c0_i32_1 = arith.constant 0 : i32
    return %c0_i32, %c0_i32_0 : i32, i32
  }
  func.func @transform_13(%arg0: i32, %arg1: i32) -> (i32, i32) {
    %c0_i32 = arith.constant 0 : i32
    %c0_i32_0 = arith.constant 0 : i32
    return %arg0, %c0_i32 : i32, i32
  }
}

</mosaic_0001>

<llo_original>
// kernel: tpu_custom_call.1
$region0: #{tpu_custom_call.1}
  #allocation0 [shape = 'u32[]', space=smem, size = 0x4, offset = 0x4, fixed_abs, tag = 'smem constant byte address 0x4 - core index']
  #allocation1 [shape = 'u32[144,128]{1,0:T(1,128)}', space=vmem, size = 0x12000, scoped, tag = 'internal scratch']
  #allocation2 [shape = 'f32[8,32]{1,0:T(8,128)}', space=vmem, size = 0x1000, scoped, tag = 'scratch operand']
  #allocation3 [shape = 'f32[8,32]{1,0:T(8,128)}', space=vmem, size = 0x1000, scoped, tag = 'scratch operand']
  #allocation4 [shape = 'f32[8,32]{1,0:T(8,128)}', space=vmem, size = 0x1000, scoped, tag = 'scratch operand']
  %s0 = inlined_call_operand.hbm [shape: f32[16,8,32], index: 0, kind: input, shape index: {}]
  %s1 = inlined_call_operand.vmem [shape: f32[16,1,8], index: 1, kind: input, shape index: {}]
  %s2 = inlined_call_operand.vmem [shape: f32[16,1], index: 2, kind: input, shape index: {}]
  %s3 = inlined_call_operand.vmem [shape: f32[16,8,32], index: 3, kind: input, shape index: {}]
  %s4 = inlined_call_operand.vmem [shape: f32[16,1,8], index: 4, kind: input, shape index: {}]
  %s5 = inlined_call_operand.vmem [shape: f32[16,1], index: 5, kind: input, shape index: {}]
  %s6 = inlined_call_operand.hbm [shape: f32[16,8,32], index: 6, kind: input, shape index: {}]
  %s7 = inlined_call_operand.vmem [shape: f32[16,1,8], index: 7, kind: input, shape index: {}]
  %s8 = inlined_call_operand.vmem [shape: f32[16,1], index: 8, kind: input, shape index: {}]
  %s9 = inlined_call_operand.hbm [shape: f32[96,128], index: 9, kind: input, shape index: {}]
  %s10 = inlined_call_operand.vmem [shape: f32[1,128], index: 10, kind: input, shape index: {}]
  %s11 = inlined_call_operand.hbm [shape: f32[128,128], index: 11, kind: input, shape index: {}]
  %s12 = inlined_call_operand.vmem [shape: f32[1,128], index: 12, kind: input, shape index: {}]
  %s13 = inlined_call_operand.hbm [shape: f32[16,128], index: 13, kind: output, shape index: {}]
  %s14 = sld [smem:[#allocation0]]
  $region109: #{tpu_custom_call.1} parent=0
    _
  %s16 = ssub.s32 1, %s14
  %s17 = scalar_select 0, %s16, %s14
  $region1: #{tpu_custom_call.1} parent=0
    #allocation5 [shape = 'u8[65536]{0}', space=vmem, size = 0x10000, scoped, tag = 'input window, operand 0']
    #allocation6 [shape = 's32[2]{0}', space=sflag, size = 0x8, scoped, tag = 'scoped memory for tpu_custom_call.1']
    #allocation7 [shape = 's32[2]{0}', space=sflag, size = 0x8, scoped, tag = 'scoped memory for tpu_custom_call.1']
    #allocation8 [shape = 'u8[65536]{0}', space=vmem, size = 0x10000, scoped, tag = 'input window, operand 6']
    #allocation9 [shape = 's32[2]{0}', space=sflag, size = 0x8, scoped, tag = 'scoped memory for tpu_custom_call.1']
    #allocation10 [shape = 'u8[49152]{0}', space=vmem, size = 0xc000, scoped, tag = 'input window, operand 9, single buffered']
    #allocation11 [shape = 'u8[65536]{0}', space=vmem, size = 0x10000, scoped, tag = 'input window, operand 11, single buffered']
    #allocation12 [shape = 's32[1]{0}', space=sflag, size = 0x4, scoped, tag = 'scoped memory for tpu_custom_call.1']
    #allocation13 [shape = 'u8[8192]{0}', space=vmem, size = 0x2000, scoped, tag = 'output window, operand 0']
    %18 = vsyncpa [#allocation6], 0
    %s19 = scalar_lea.sflag [#allocation6], 1
    %20 = vsyncpa %s19, 0
    %21 = vsyncpa [#allocation9], 0
    %s22 = scalar_lea.sflag [#allocation9], 1
    %23 = vsyncpa %s22, 0
    %24 = vsyncpa [#allocation12], 0
    %25 = vsyncpa [#allocation7], 0
    %s26 = scalar_lea.sflag [#allocation7], 1
    %27 = vsyncpa %s26, 0
    loop: start=0, step=1, limit=4
    $region2: #{tpu_custom_call.1} parent=1 // loop_pre_header
      _
    $region3: #{tpu_custom_call.1} parent=1 // loop_header
      %s29 = sphi 0, %s33
      %p30 = scmp.ge.s32.totalorder %s29, 4
      %s36 = sphi 0, %s48
      %s37 = sphi 0, %s44
      %s38 = sphi 0, %s36
      %s39 = sphi 0, %s37
      %s40 = sphi 0, %s38
      %s41 = sphi 0, %s39
      %s53 = sphi 0, %s55
      %s56 = sphi 0, %s53
      %s57 = sphi 0, %s56
      %s73 = sphi 0, %s57
      %s81 = sphi 0, %s83
      %s84 = sphi 0, %s81
      %s85 = sphi 0, %s84
      %s101 = sphi 0, %s85
      %s107 = sphi 0, %s109
      %s110 = sphi 0, %s107
      %s111 = sphi 0, %s110
      %s127 = sphi 0, %s111
      %s135 = sphi 0, %s137
      %s138 = sphi 0, %s135
      %s139 = sphi 0, %s138
      %s155 = sphi 0, %s139
      %s163 = sphi 0, %s165
      %s166 = sphi 0, %s163
      %s167 = sphi 0, %s166
      %s183 = sphi 0, %s167
      %s189 = sphi 0, %s191
      %s192 = sphi 0, %s189
      %s193 = sphi 0, %s192
      %s209 = sphi 0, %s193
      %s217 = sphi 0, %s219
      %s220 = sphi 0, %s217
      %s221 = sphi 0, %s220
      %s237 = sphi 0, %s221
      %s245 = sphi 0, %s247
      %s248 = sphi 0, %s245
      %s249 = sphi 0, %s248
      %s265 = sphi 0, %s249
      %s271 = sphi 0, %s273
      %s274 = sphi 0, %s271
      %s275 = sphi 0, %s274
      %s291 = sphi 0, %s275
      %s295 = sphi 0, %s295
      %s297 = sphi 0, %s295
      %s298 = sphi 0, %s297
      %s312 = sphi 0, %s298
      %s316 = sphi 0, %s316
      %s318 = sphi 0, %s316
      %s319 = sphi 0, %s318
      %s333 = sphi 0, %s319
      %s337 = sphi 0, %s337
      %s339 = sphi 0, %s337
      %s340 = sphi 0, %s339
      %s354 = sphi 0, %s340
      %s358 = sphi 0, %s358
      %s360 = sphi 0, %s358
      %s361 = sphi 0, %s360
      %s375 = sphi 0, %s361
      %s381 = sphi 0, %s383
      %s384 = sphi 0, %s381
      %s385 = sphi 0, %s384
      %s401 = sphi 0, %s385
    $region4: #{tpu_custom_call.1} parent=1 // loop_header_branch
      %32 = sbr.rel (%p30) target = $region8
    $region5: #{tpu_custom_call.1} parent=1 // loop_body
      %s34 = ssub.s32 %s29, 1
      %s35 = ssub.s32 %s29, 2
      %s42 = sadd.s32 1, %s37
      %p43 = scmp.ge.s32.totalorder %s42, 1
      %s44 = scalar_select %p43, 0, %s42
      %s45 = sadd.s32 1, %s36
      %s46 = scalar_select %p43, %s45, %s36
      %p47 = scmp.ge.s32.totalorder %s46, 2
      %s48 = scalar_select %p47, 0, %s46
      %s49 = ssub.s32 %s36, %s48
      %s50 = ssub.s32 %s37, %s44
      %s51 = sor.u32 %s49, %s50
      %p52 = scmp.eq.s32.totalorder %s51, 0
      %s54 = sadd.s32 %s53, 1
      %s55 = scalar_select %p52, %s53, %s54
      %p58 = pneg %p52
      %p59 = scmp.eq.s32.totalorder %s29, 1
      %p60 = por %p58, %p59
      %p61 = scmp.ne.s32.totalorder %s53, %s56
      %p62 = scmp.eq.s32.totalorder %s29, 0
      %p63 = por %p61, %p62
      %p64 = scmp.ne.s32.totalorder %s53, %s56
      %p65 = scmp.eq.s32.totalorder %s34, 1
      %p66 = por %p64, %p65
      %p67 = scmp.ne.s32.totalorder %s56, %s57
      %p68 = scmp.eq.s32.totalorder %s34, 0
      %p69 = por %p67, %p68
      %p70 = scmp.ne.s32.totalorder %s56, %s57
      %p71 = scmp.eq.s32.totalorder %s35, 1
      %p72 = por %p70, %p71
      %p74 = scmp.ne.s32.totalorder %s57, %s73
      %p75 = scmp.eq.s32.totalorder %s35, 0
      %p76 = por %p74, %p75
      %s77 = ssub.s32 %s36, %s48
      %s78 = ssub.s32 %s37, %s44
      %s79 = sor.u32 %s77, %s78
      %p80 = scmp.eq.s32.totalorder %s79, 0
      %s82 = sadd.s32 %s81, 1
      %s83 = scalar_select %p80, %s81, %s82
      %p86 = pneg %p80
      %p87 = scmp.eq.s32.totalorder %s29, 1
      %p88 = por %p86, %p87
      %p89 = scmp.ne.s32.totalorder %s81, %s84
      %p90 = scmp.eq.s32.totalorder %s29, 0
      %p91 = por %p89, %p90
      %p92 = scmp.ne.s32.totalorder %s81, %s84
      %p93 = scmp.eq.s32.totalorder %s34, 1
      %p94 = por %p92, %p93
      %p95 = scmp.ne.s32.totalorder %s84, %s85
      %p96 = scmp.eq.s32.totalorder %s34, 0
      %p97 = por %p95, %p96
      %p98 = scmp.ne.s32.totalorder %s84, %s85
      %p99 = scmp.eq.s32.totalorder %s35, 1
      %p100 = por %p98, %p99
      %p102 = scmp.ne.s32.totalorder %s85, %s101
      %p103 = scmp.eq.s32.totalorder %s35, 0
      %p104 = por %p102, %p103
      %s105 = ssub.s32 %s36, %s48
      %p106 = scmp.eq.s32.totalorder %s105, 0
      %s108 = sadd.s32 %s107, 1
      %s109 = scalar_select %p106, %s107, %s108
      %p112 = pneg %p106
      %p113 = scmp.eq.s32.totalorder %s29, 1
      %p114 = por %p112, %p113
      %p115 = scmp.ne.s32.totalorder %s107, %s110
      %p116 = scmp.eq.s32.totalorder %s29, 0
      %p117 = por %p115, %p116
      %p118 = scmp.ne.s32.totalorder %s107, %s110
      %p119 = scmp.eq.s32.totalorder %s34, 1
      %p120 = por %p118, %p119
      %p121 = scmp.ne.s32.totalorder %s110, %s111
      %p122 = scmp.eq.s32.totalorder %s34, 0
      %p123 = por %p121, %p122
      %p124 = scmp.ne.s32.totalorder %s110, %s111
      %p125 = scmp.eq.s32.totalorder %s35, 1
      %p126 = por %p124, %p125
      %p128 = scmp.ne.s32.totalorder %s111, %s127
      %p129 = scmp.eq.s32.totalorder %s35, 0
      %p130 = por %p128, %p129
      %s131 = ssub.s32 %s36, %s48
      %s132 = ssub.s32 %s37, %s44
      %s133 = sor.u32 %s131, %s132
      %p134 = scmp.eq.s32.totalorder %s133, 0
      %s136 = sadd.s32 %s135, 1
      %s137 = scalar_select %p134, %s135, %s136
      %p140 = pneg %p134
      %p141 = scmp.eq.s32.totalorder %s29, 1
      %p142 = por %p140, %p141
      %p143 = scmp.ne.s32.totalorder %s135, %s138
      %p144 = scmp.eq.s32.totalorder %s29, 0
      %p145 = por %p143, %p144
      %p146 = scmp.ne.s32.totalorder %s135, %s138
      %p147 = scmp.eq.s32.totalorder %s34, 1
      %p148 = por %p146, %p147
      %p149 = scmp.ne.s32.totalorder %s138, %s139
      %p150 = scmp.eq.s32.totalorder %s34, 0
      %p151 = por %p149, %p150
      %p152 = scmp.ne.s32.totalorder %s138, %s139
      %p153 = scmp.eq.s32.totalorder %s35, 1
      %p154 = por %p152, %p153
      %p156 = scmp.ne.s32.totalorder %s139, %s155
      %p157 = scmp.eq.s32.totalorder %s35, 0
      %p158 = por %p156, %p157
      %s159 = ssub.s32 %s36, %s48
      %s160 = ssub.s32 %s37, %s44
      %s161 = sor.u32 %s159, %s160
      %p162 = scmp.eq.s32.totalorder %s161, 0
      %s164 = sadd.s32 %s163, 1
      %s165 = scalar_select %p162, %s163, %s164
      %p168 = pneg %p162
      %p169 = scmp.eq.s32.totalorder %s29, 1
      %p170 = por %p168, %p169
      %p171 = scmp.ne.s32.totalorder %s163, %s166
      %p172 = scmp.eq.s32.totalorder %s29, 0
      %p173 = por %p171, %p172
      %p174 = scmp.ne.s32.totalorder %s163, %s166
      %p175 = scmp.eq.s32.totalorder %s34, 1
      %p176 = por %p174, %p175
      %p177 = scmp.ne.s32.totalorder %s166, %s167
      %p178 = scmp.eq.s32.totalorder %s34, 0
      %p179 = por %p177, %p178
      %p180 = scmp.ne.s32.totalorder %s166, %s167
      %p181 = scmp.eq.s32.totalorder %s35, 1
      %p182 = por %p180, %p181
      %p184 = scmp.ne.s32.totalorder %s167, %s183
      %p185 = scmp.eq.s32.totalorder %s35, 0
      %p186 = por %p184, %p185
      %s187 = ssub.s32 %s36, %s48
      %p188 = scmp.eq.s32.totalorder %s187, 0
      %s190 = sadd.s32 %s189, 1
      %s191 = scalar_select %p188, %s189, %s190
      %p194 = pneg %p188
      %p195 = scmp.eq.s32.totalorder %s29, 1
      %p196 = por %p194, %p195
      %p197 = scmp.ne.s32.totalorder %s189, %s192
      %p198 = scmp.eq.s32.totalorder %s29, 0
      %p199 = por %p197, %p198
      %p200 = scmp.ne.s32.totalorder %s189, %s192
      %p201 = scmp.eq.s32.totalorder %s34, 1
      %p202 = por %p200, %p201
      %p203 = scmp.ne.s32.totalorder %s192, %s193
      %p204 = scmp.eq.s32.totalorder %s34, 0
      %p205 = por %p203, %p204
      %p206 = scmp.ne.s32.totalorder %s192, %s193
      %p207 = scmp.eq.s32.totalorder %s35, 1
      %p208 = por %p206, %p207
      %p210 = scmp.ne.s32.totalorder %s193, %s209
      %p211 = scmp.eq.s32.totalorder %s35, 0
      %p212 = por %p210, %p211
      %s213 = ssub.s32 %s36, %s48
      %s214 = ssub.s32 %s37, %s44
      %s215 = sor.u32 %s213, %s214
      %p216 = scmp.eq.s32.totalorder %s215, 0
      %s218 = sadd.s32 %s217, 1
      %s219 = scalar_select %p216, %s217, %s218
      %p222 = pneg %p216
      %p223 = scmp.eq.s32.totalorder %s29, 1
      %p224 = por %p222, %p223
      %p225 = scmp.ne.s32.totalorder %s217, %s220
      %p226 = scmp.eq.s32.totalorder %s29, 0
      %p227 = por %p225, %p226
      %p228 = scmp.ne.s32.totalorder %s217, %s220
      %p229 = scmp.eq.s32.totalorder %s34, 1
      %p230 = por %p228, %p229
      %p231 = scmp.ne.s32.totalorder %s220, %s221
      %p232 = scmp.eq.s32.totalorder %s34, 0
      %p233 = por %p231, %p232
      %p234 = scmp.ne.s32.totalorder %s220, %s221
      %p235 = scmp.eq.s32.totalorder %s35, 1
      %p236 = por %p234, %p235
      %p238 = scmp.ne.s32.totalorder %s221, %s237
      %p239 = scmp.eq.s32.totalorder %s35, 0
      %p240 = por %p238, %p239
      %s241 = ssub.s32 %s36, %s48
      %s242 = ssub.s32 %s37, %s44
      %s243 = sor.u32 %s241, %s242
      %p244 = scmp.eq.s32.totalorder %s243, 0
      %s246 = sadd.s32 %s245, 1
      %s247 = scalar_select %p244, %s245, %s246
      %p250 = pneg %p244
      %p251 = scmp.eq.s32.totalorder %s29, 1
      %p252 = por %p250, %p251
      %p253 = scmp.ne.s32.totalorder %s245, %s248
      %p254 = scmp.eq.s32.totalorder %s29, 0
      %p255 = por %p253, %p254
      %p256 = scmp.ne.s32.totalorder %s245, %s248
      %p257 = scmp.eq.s32.totalorder %s34, 1
      %p258 = por %p256, %p257
      %p259 = scmp.ne.s32.totalorder %s248, %s249
      %p260 = scmp.eq.s32.totalorder %s34, 0
      %p261 = por %p259, %p260
      %p262 = scmp.ne.s32.totalorder %s248, %s249
      %p263 = scmp.eq.s32.totalorder %s35, 1
      %p264 = por %p262, %p263
      %p266 = scmp.ne.s32.totalorder %s249, %s265
      %p267 = scmp.eq.s32.totalorder %s35, 0
      %p268 = por %p266, %p267
      %s269 = ssub.s32 %s36, %s48
      %p270 = scmp.eq.s32.totalorder %s269, 0
      %s272 = sadd.s32 %s271, 1
      %s273 = scalar_select %p270, %s271, %s272
      %p276 = pneg %p270
      %p277 = scmp.eq.s32.totalorder %s29, 1
      %p278 = por %p276, %p277
      %p279 = scmp.ne.s32.totalorder %s271, %s274
      %p280 = scmp.eq.s32.totalorder %s29, 0
      %p281 = por %p279, %p280
      %p282 = scmp.ne.s32.totalorder %s271, %s274
      %p283 = scmp.eq.s32.totalorder %s34, 1
      %p284 = por %p282, %p283
      %p285 = scmp.ne.s32.totalorder %s274, %s275
      %p286 = scmp.eq.s32.totalorder %s34, 0
      %p287 = por %p285, %p286
      %p288 = scmp.ne.s32.totalorder %s274, %s275
      %p289 = scmp.eq.s32.totalorder %s35, 1
      %p290 = por %p288, %p289
      %p292 = scmp.ne.s32.totalorder %s275, %s291
      %p293 = scmp.eq.s32.totalorder %s35, 0
      %p294 = por %p292, %p293
      %s296 = sadd.s32 %s295, 1
      %p299 = scmp.eq.s32.totalorder %s29, 1
      %p300 = scmp.ne.s32.totalorder %s295, %s297
      %p301 = scmp.eq.s32.totalorder %s29, 0
      %p302 = por %p300, %p301
      %p303 = scmp.ne.s32.totalorder %s295, %s297
      %p304 = scmp.eq.s32.totalorder %s34, 1
      %p305 = por %p303, %p304
      %p306 = scmp.ne.s32.totalorder %s297, %s298
      %p307 = scmp.eq.s32.totalorder %s34, 0
      %p308 = por %p306, %p307
      %p309 = scmp.ne.s32.totalorder %s297, %s298
      %p310 = scmp.eq.s32.totalorder %s35, 1
      %p311 = por %p309, %p310
      %p313 = scmp.ne.s32.totalorder %s298, %s312
      %p314 = scmp.eq.s32.totalorder %s35, 0
      %p315 = por %p313, %p314
      %s317 = sadd.s32 %s316, 1
      %p320 = scmp.eq.s32.totalorder %s29, 1
      %p321 = scmp.ne.s32.totalorder %s316, %s318
      %p322 = scmp.eq.s32.totalorder %s29, 0
      %p323 = por %p321, %p322
      %p324 = scmp.ne.s32.totalorder %s316, %s318
      %p325 = scmp.eq.s32.totalorder %s34, 1
      %p326 = por %p324, %p325
      %p327 = scmp.ne.s32.totalorder %s318, %s319
      %p328 = scmp.eq.s32.totalorder %s34, 0
      %p329 = por %p327, %p328
      %p330 = scmp.ne.s32.totalorder %s318, %s319
      %p331 = scmp.eq.s32.totalorder %s35, 1
      %p332 = por %p330, %p331
      %p334 = scmp.ne.s32.totalorder %s319, %s333
      %p335 = scmp.eq.s32.totalorder %s35, 0
      %p336 = por %p334, %p335
      %s338 = sadd.s32 %s337, 1
      %p341 = scmp.eq.s32.totalorder %s29, 1
      %p342 = scmp.ne.s32.totalorder %s337, %s339
      %p343 = scmp.eq.s32.totalorder %s29, 0
      %p344 = por %p342, %p343
      %p345 = scmp.ne.s32.totalorder %s337, %s339
      %p346 = scmp.eq.s32.totalorder %s34, 1
      %p347 = por %p345, %p346
      %p348 = scmp.ne.s32.totalorder %s339, %s340
      %p349 = scmp.eq.s32.totalorder %s34, 0
      %p350 = por %p348, %p349
      %p351 = scmp.ne.s32.totalorder %s339, %s340
      %p352 = scmp.eq.s32.totalorder %s35, 1
      %p353 = por %p351, %p352
      %p355 = scmp.ne.s32.totalorder %s340, %s354
      %p356 = scmp.eq.s32.totalorder %s35, 0
      %p357 = por %p355, %p356
      %s359 = sadd.s32 %s358, 1
      %p362 = scmp.eq.s32.totalorder %s29, 1
      %p363 = scmp.ne.s32.totalorder %s358, %s360
      %p364 = scmp.eq.s32.totalorder %s29, 0
      %p365 = por %p363, %p364
      %p366 = scmp.ne.s32.totalorder %s358, %s360
      %p367 = scmp.eq.s32.totalorder %s34, 1
      %p368 = por %p366, %p367
      %p369 = scmp.ne.s32.totalorder %s360, %s361
      %p370 = scmp.eq.s32.totalorder %s34, 0
      %p371 = por %p369, %p370
      %p372 = scmp.ne.s32.totalorder %s360, %s361
      %p373 = scmp.eq.s32.totalorder %s35, 1
      %p374 = por %p372, %p373
      %p376 = scmp.ne.s32.totalorder %s361, %s375
      %p377 = scmp.eq.s32.totalorder %s35, 0
      %p378 = por %p376, %p377
      %s379 = ssub.s32 %s36, %s48
      %p380 = scmp.eq.s32.totalorder %s379, 0
      %s382 = sadd.s32 %s381, 1
      %s383 = scalar_select %p380, %s381, %s382
      %p386 = pneg %p380
      %p387 = scmp.eq.s32.totalorder %s29, 1
      %p388 = por %p386, %p387
      %p389 = scmp.ne.s32.totalorder %s381, %s384
      %p390 = scmp.eq.s32.totalorder %s29, 0
      %p391 = por %p389, %p390
      %p392 = scmp.ne.s32.totalorder %s381, %s384
      %p393 = scmp.eq.s32.totalorder %s34, 1
      %p394 = por %p392, %p393
      %p395 = scmp.ne.s32.totalorder %s384, %s385
      %p396 = scmp.eq.s32.totalorder %s34, 0
      %p397 = por %p395, %p396
      %p398 = scmp.ne.s32.totalorder %s384, %s385
      %p399 = scmp.eq.s32.totalorder %s35, 1
      %p400 = por %p398, %p399
      %p402 = scmp.ne.s32.totalorder %s385, %s401
      %p403 = scmp.eq.s32.totalorder %s35, 0
      %p404 = por %p402, %p403
      %p405 = scmp.le.s32.totalorder 1, %s29
      %p406 = scmp.lt.s32.totalorder %s29, 3
      %p407 = pnand %p405, %p406
      %p408 = pneg %p407
      // Predicated region
      $region9: #{tpu_custom_call.1} parent=5 // pred_check
        _
      $region10: #{tpu_custom_call.1} parent=5 // pred_check_branch
        %410 = sbr.rel (%p407) target = $region12
      $region11: #{tpu_custom_call.1} parent=5 // pred_region
        %s411 = ssub.s32 %s29, 1
        // Predicated region
        $region13: #{tpu_custom_call.1} parent=11 // pred_check
          %p412 = pneg %p308
        $region14: #{tpu_custom_call.1} parent=11 // pred_check_branch
          %414 = sbr.rel (%p412) target = $region16
        $region15: #{tpu_custom_call.1} parent=11 // pred_region
          %s416 = ssub.s32 1536, 1536
          %417 = vsyncadd [#allocation9], %s416
          %s418 = sshll.u32 [#allocation10], 4
          %s419 = int_to_ptr.vmem [resolvable:$true] %s418
          %424 = dma.hbm_to_vmem [thread:$0]  %s9, 1536, %s419, [#allocation9], 128, 128, 8
        $region16: #{tpu_custom_call.1} parent=11 // pred_fallthru
          _
        // Predicated region
        $region17: #{tpu_custom_call.1} parent=11 // pred_check
          %p425 = pneg %p329
        $region18: #{tpu_custom_call.1} parent=11 // pred_check_branch
          %427 = sbr.rel (%p425) target = $region20
        $region19: #{tpu_custom_call.1} parent=11 // pred_region
          _
        $region20: #{tpu_custom_call.1} parent=11 // pred_fallthru
          _
        // Predicated region
        $region21: #{tpu_custom_call.1} parent=11 // pred_check
          %p428 = pneg %p350
        $region22: #{tpu_custom_call.1} parent=11 // pred_check_branch
          %430 = sbr.rel (%p428) target = $region24
        $region23: #{tpu_custom_call.1} parent=11 // pred_region
          %s432 = ssub.s32 2048, 2048
          %433 = vsyncadd [#allocation12], %s432
          %s434 = sshll.u32 [#allocation11], 4
          %s435 = int_to_ptr.vmem [resolvable:$true] %s434
          %440 = dma.hbm_to_vmem [thread:$0]  %s11, 2048, %s435, [#allocation12], 128, 128, 8
        $region24: #{tpu_custom_call.1} parent=11 // pred_fallthru
          _
        // Predicated region
        $region25: #{tpu_custom_call.1} parent=11 // pred_check
          %p441 = pneg %p371
        $region26: #{tpu_custom_call.1} parent=11 // pred_check_branch
          %443 = sbr.rel (%p441) target = $region28
        $region27: #{tpu_custom_call.1} parent=11 // pred_region
          _
        $region28: #{tpu_custom_call.1} parent=11 // pred_fallthru
          _
      $region12: #{tpu_custom_call.1} parent=5 // pred_fallthru
        _
      %p444 = scmp.lt.s32.totalorder %s29, 2
      // Predicated region
      $region29: #{tpu_custom_call.1} parent=5 // pred_check
        %p445 = pneg %p444
      $region30: #{tpu_custom_call.1} parent=5 // pred_check_branch
        %447 = sbr.rel (%p445) target = $region32
      $region31: #{tpu_custom_call.1} parent=5 // pred_region
        // Predicated region
        $region33: #{tpu_custom_call.1} parent=31 // pred_check
          %p448 = pneg %p63
        $region34: #{tpu_custom_call.1} parent=31 // pred_check_branch
          %450 = sbr.rel (%p448) target = $region36
        $region35: #{tpu_custom_call.1} parent=31 // pred_region
          %s451 = sand.u32 %s53, 1
          %s452 = scalar_lea.sflag [#allocation6], %s451
          %s453 = sand.u32 %s53, 1
          %s454 = smul.addr %s453, 64
          %s455 = scalar_lea.vmem [#allocation5], %s454
          %s456 = smul.u32 8, %s36
          %s458 = ssub.s32 1024, 1024
          %459 = vsyncadd %s452, %s458
          %s460 = sadd.s32 %s37, %s456
          %s461 = smul.addr %s460, 128
          %s462 = scalar_lea.hbm %s0, %s461
          %s463 = sshll.u32 %s455, 4
          %s464 = int_to_ptr.vmem [resolvable:$true] %s463
          %469 = dma.hbm_to_vmem [thread:$0]  %s462, 1024, %s464, %s452, 128, 128, 8
        $region36: #{tpu_custom_call.1} parent=31 // pred_fallthru
          _
        // Predicated region
        $region37: #{tpu_custom_call.1} parent=31 // pred_check
          %p470 = pneg %p91
        $region38: #{tpu_custom_call.1} parent=31 // pred_check_branch
          %472 = sbr.rel (%p470) target = $region40
        $region39: #{tpu_custom_call.1} parent=31 // pred_region
          %s473 = smul.u32 8, %s36
          %p474 = scmp.lt.s32.totalorder %s473, 15
          %s475 = scalar_select %p474, %s473, 15
          %p476 = scmp.lt.s32.totalorder %s37, 0
          %s477 = scalar_select %p476, %s37, 0
          %s478 = sadd.s32 %s477, %s475
          %s479 = scalar_lea.vmem %s1, %s478
          %s480 = smul.u32 8, %s36
        $region40: #{tpu_custom_call.1} parent=31 // pred_fallthru
          _
        // Predicated region
        $region41: #{tpu_custom_call.1} parent=31 // pred_check
          %p481 = pneg %p117
        $region42: #{tpu_custom_call.1} parent=31 // pred_check_branch
          %483 = sbr.rel (%p481) target = $region44
        $region43: #{tpu_custom_call.1} parent=31 // pred_region
          %p484 = scmp.lt.s32.totalorder %s36, 1
          %s485 = scalar_select %p484, %s36, 1
          %s486 = smul.addr %s485, 8
          %s487 = scalar_lea.vmem %s2, %s486
        $region44: #{tpu_custom_call.1} parent=31 // pred_fallthru
          _
        // Predicated region
        $region45: #{tpu_custom_call.1} parent=31 // pred_check
          %p488 = pneg %p145
        $region46: #{tpu_custom_call.1} parent=31 // pred_check_branch
          %490 = sbr.rel (%p488) target = $region48
        $region47: #{tpu_custom_call.1} parent=31 // pred_region
          %s491 = smul.u32 8, %s36
          %p492 = scmp.lt.s32.totalorder %s491, 15
          %s493 = scalar_select %p492, %s491, 15
          %p494 = scmp.lt.s32.totalorder %s37, 0
          %s495 = scalar_select %p494, %s37, 0
          %s496 = sadd.s32 %s495, %s493
          %s497 = smul.addr %s496, 8
          %s498 = scalar_lea.vmem %s3, %s497
          %s499 = smul.u32 8, %s36
        $region48: #{tpu_custom_call.1} parent=31 // pred_fallthru
          _
        // Predicated region
        $region49: #{tpu_custom_call.1} parent=31 // pred_check
          %p500 = pneg %p173
        $region50: #{tpu_custom_call.1} parent=31 // pred_check_branch
          %502 = sbr.rel (%p500) target = $region52
        $region51: #{tpu_custom_call.1} parent=31 // pred_region
          %s503 = smul.u32 8, %s36
          %p504 = scmp.lt.s32.totalorder %s503, 15
          %s505 = scalar_select %p504, %s503, 15
          %p506 = scmp.lt.s32.totalorder %s37, 0
          %s507 = scalar_select %p506, %s37, 0
          %s508 = sadd.s32 %s507, %s505
          %s509 = scalar_lea.vmem %s4, %s508
          %s510 = smul.u32 8, %s36
        $region52: #{tpu_custom_call.1} parent=31 // pred_fallthru
          _
        // Predicated region
        $region53: #{tpu_custom_call.1} parent=31 // pred_check
          %p511 = pneg %p199
        $region54: #{tpu_custom_call.1} parent=31 // pred_check_branch
          %513 = sbr.rel (%p511) target = $region56
        $region55: #{tpu_custom_call.1} parent=31 // pred_region
          %p514 = scmp.lt.s32.totalorder %s36, 1
          %s515 = scalar_select %p514, %s36, 1
          %s516 = smul.addr %s515, 8
          %s517 = scalar_lea.vmem %s5, %s516
        $region56: #{tpu_custom_call.1} parent=31 // pred_fallthru
          _
        // Predicated region
        $region57: #{tpu_custom_call.1} parent=31 // pred_check
          %p518 = pneg %p227
        $region58: #{tpu_custom_call.1} parent=31 // pred_check_branch
          %520 = sbr.rel (%p518) target = $region60
        $region59: #{tpu_custom_call.1} parent=31 // pred_region
          %s521 = sand.u32 %s29, 1
          %s522 = scalar_lea.sflag [#allocation9], %s521
          %s523 = sand.u32 %s217, 1
          %s524 = smul.addr %s523, 64
          %s525 = scalar_lea.vmem [#allocation8], %s524
          %s526 = smul.u32 8, %s36
          %s528 = ssub.s32 1024, 1024
          %529 = vsyncadd %s522, %s528
          %s530 = sadd.s32 %s37, %s526
          %s531 = smul.addr %s530, 128
          %s532 = scalar_lea.hbm %s6, %s531
          %s533 = sshll.u32 %s525, 4
          %s534 = int_to_ptr.vmem [resolvable:$true] %s533
          %539 = dma.hbm_to_vmem [thread:$0]  %s532, 1024, %s534, %s522, 128, 128, 8
        $region60: #{tpu_custom_call.1} parent=31 // pred_fallthru
          _
        // Predicated region
        $region61: #{tpu_custom_call.1} parent=31 // pred_check
          %p540 = pneg %p255
        $region62: #{tpu_custom_call.1} parent=31 // pred_check_branch
          %542 = sbr.rel (%p540) target = $region64
        $region63: #{tpu_custom_call.1} parent=31 // pred_region
          %s543 = smul.u32 8, %s36
          %p544 = scmp.lt.s32.totalorder %s543, 15
          %s545 = scalar_select %p544, %s543, 15
          %p546 = scmp.lt.s32.totalorder %s37, 0
          %s547 = scalar_select %p546, %s37, 0
          %s548 = sadd.s32 %s547, %s545
          %s549 = scalar_lea.vmem %s7, %s548
          %s550 = smul.u32 8, %s36
        $region64: #{tpu_custom_call.1} parent=31 // pred_fallthru
          _
        // Predicated region
        $region65: #{tpu_custom_call.1} parent=31 // pred_check
          %p551 = pneg %p281
        $region66: #{tpu_custom_call.1} parent=31 // pred_check_branch
          %553 = sbr.rel (%p551) target = $region68
        $region67: #{tpu_custom_call.1} parent=31 // pred_region
          %p554 = scmp.lt.s32.totalorder %s36, 1
          %s555 = scalar_select %p554, %s36, 1
          %s556 = smul.addr %s555, 8
          %s557 = scalar_lea.vmem %s8, %s556
        $region68: #{tpu_custom_call.1} parent=31 // pred_fallthru
          _
      $region32: #{tpu_custom_call.1} parent=5 // pred_fallthru
        _
      %p558 = scmp.le.s32.totalorder 1, %s29
      %p559 = scmp.lt.s32.totalorder %s29, 3
      %p560 = pnand %p558, %p559
      %p561 = pneg %p560
      // Predicated region
      $region69: #{tpu_custom_call.1} parent=5 // pred_check
        _
      $region70: #{tpu_custom_call.1} parent=5 // pred_check_branch
        %563 = sbr.rel (%p560) target = $region72
      $region71: #{tpu_custom_call.1} parent=5 // pred_region
        %s564 = ssub.s32 %s29, 1
        %s565 = sand.u32 %s56, 1
        %s566 = scalar_lea.sflag [#allocation6], %s565
        %s567 = sand.u32 %s56, 1
        %s568 = smul.addr %s567, 64
        %s569 = scalar_lea.vmem [#allocation5], %s568
        // Predicated region
        $region73: #{tpu_custom_call.1} parent=71 // pred_check
          %p570 = pneg %p69
        $region74: #{tpu_custom_call.1} parent=71 // pred_check_branch
          %572 = sbr.rel (%p570) target = $region76
        $region75: #{tpu_custom_call.1} parent=71 // pred_region
          %573 = dma.done %s566, 1024
        $region76: #{tpu_custom_call.1} parent=71 // pred_fallthru
          _
        %s574 = sand.u32 %s34, 1
        %s575 = scalar_lea.sflag [#allocation9], %s574
        %s576 = sand.u32 %s220, 1
        %s577 = smul.addr %s576, 64
        %s578 = scalar_lea.vmem [#allocation8], %s577
        // Predicated region
        $region77: #{tpu_custom_call.1} parent=71 // pred_check
          %p579 = pneg %p233
        $region78: #{tpu_custom_call.1} parent=71 // pred_check_branch
          %581 = sbr.rel (%p579) target = $region80
        $region79: #{tpu_custom_call.1} parent=71 // pred_region
          %582 = dma.done %s575, 1024
        $region80: #{tpu_custom_call.1} parent=71 // pred_fallthru
          _
        // Predicated region
        $region81: #{tpu_custom_call.1} parent=71 // pred_check
          %p583 = pneg %p308
        $region82: #{tpu_custom_call.1} parent=71 // pred_check_branch
          %585 = sbr.rel (%p583) target = $region84
        $region83: #{tpu_custom_call.1} parent=71 // pred_region
          %586 = dma.done [#allocation9], 1536
        $region84: #{tpu_custom_call.1} parent=71 // pred_fallthru
          _
        // Predicated region
        $region85: #{tpu_custom_call.1} parent=71 // pred_check
          %p587 = pneg %p350
        $region86: #{tpu_custom_call.1} parent=71 // pred_check_branch
          %589 = sbr.rel (%p587) target = $region88
        $region87: #{tpu_custom_call.1} parent=71 // pred_region
          %590 = dma.done [#allocation12], 2048
        $region88: #{tpu_custom_call.1} parent=71 // pred_fallthru
          _
        %s591 = sand.u32 %s56, 1
        %s592 = scalar_lea.sflag [#allocation6], %s591
        %s593 = sand.u32 %s56, 1
        %s594 = smul.addr %s593, 64
        %s595 = scalar_lea.vmem [#allocation5], %s594
        %p596 = pneg %p69
        %p597 = pneg %p66
        %s598 = smul.u32 8, %s38
        %p599 = scmp.lt.s32.totalorder %s598, 15
        %s600 = scalar_select %p599, %s598, 15
        %p601 = scmp.lt.s32.totalorder %s39, 0
        %s602 = scalar_select %p601, %s39, 0
        %s603 = sadd.s32 %s602, %s600
        %s604 = scalar_lea.vmem %s1, %s603
        %p605 = pneg %p97
        %p606 = pneg %p94
        %p607 = scmp.lt.s32.totalorder %s38, 1
        %s608 = scalar_select %p607, %s38, 1
        %s609 = smul.addr %s608, 8
        %s610 = scalar_lea.vmem %s2, %s609
        %p611 = pneg %p123
        %p612 = pneg %p120
        %s613 = smul.u32 8, %s38
        %p614 = scmp.lt.s32.totalorder %s613, 15
        %s615 = scalar_select %p614, %s613, 15
        %p616 = scmp.lt.s32.totalorder %s39, 0
        %s617 = scalar_select %p616, %s39, 0
        %s618 = sadd.s32 %s617, %s615
        %s619 = smul.addr %s618, 8
        %s620 = scalar_lea.vmem %s3, %s619
        %p621 = pneg %p151
        %p622 = pneg %p148
        %s623 = smul.u32 8, %s38
        %p624 = scmp.lt.s32.totalorder %s623, 15
        %s625 = scalar_select %p624, %s623, 15
        %p626 = scmp.lt.s32.totalorder %s39, 0
        %s627 = scalar_select %p626, %s39, 0
        %s628 = sadd.s32 %s627, %s625
        %s629 = scalar_lea.vmem %s4, %s628
        %p630 = pneg %p179
        %p631 = pneg %p176
        %p632 = scmp.lt.s32.totalorder %s38, 1
        %s633 = scalar_select %p632, %s38, 1
        %s634 = smul.addr %s633, 8
        %s635 = scalar_lea.vmem %s5, %s634
        %p636 = pneg %p205
        %p637 = pneg %p202
        %s638 = sand.u32 %s34, 1
        %s639 = scalar_lea.sflag [#allocation9], %s638
        %s640 = sand.u32 %s220, 1
        %s641 = smul.addr %s640, 64
        %s642 = scalar_lea.vmem [#allocation8], %s641
        %p643 = pneg %p233
        %p644 = pneg %p230
        %s645 = smul.u32 8, %s38
        %p646 = scmp.lt.s32.totalorder %s645, 15
        %s647 = scalar_select %p646, %s645, 15
        %p648 = scmp.lt.s32.totalorder %s39, 0
        %s649 = scalar_select %p648, %s39, 0
        %s650 = sadd.s32 %s649, %s647
        %s651 = scalar_lea.vmem %s7, %s650
        %p652 = pneg %p261
        %p653 = pneg %p258
        %p654 = scmp.lt.s32.totalorder %s38, 1
        %s655 = scalar_select %p654, %s38, 1
        %s656 = smul.addr %s655, 8
        %s657 = scalar_lea.vmem %s8, %s656
        %p658 = pneg %p287
        %p659 = pneg %p284
        %p660 = pneg %p308
        %p661 = pneg %p305
        %p662 = pneg %p329
        %p663 = pneg %p326
        %p664 = pneg %p350
        %p665 = pneg %p347
        %p666 = pneg %p371
        %p667 = pneg %p368
        %p668 = pneg %p397
        %p669 = pneg %p394
        %s670 = sand.u32 %s384, 1
        %s671 = scalar_lea.sflag [#allocation7], %s670
        %s672 = sand.u32 %s384, 1
        %s673 = smul.addr %s672, 8
        %s674 = scalar_lea.vmem [#allocation13], %s673
        %s675 = smul.u32 8, %s38
        %s676 = smul.u32 8, %s38
        %p677 = scmp.lt.s32.totalorder %s676, 15
        %s678 = scalar_select %p677, %s676, 15
        %p679 = scmp.lt.s32.totalorder %s39, 0
        %s680 = scalar_select %p679, %s39, 0
        %s681 = sadd.s32 %s680, %s678
        %s682 = scalar_lea.vmem %s1, %s681
        %s683 = smul.u32 8, %s38
        %p684 = scmp.lt.s32.totalorder %s38, 1
        %s685 = scalar_select %p684, %s38, 1
        %s686 = smul.addr %s685, 8
        %s687 = scalar_lea.vmem %s2, %s686
        %s688 = smul.u32 8, %s38
        %p689 = scmp.lt.s32.totalorder %s688, 15
        %s690 = scalar_select %p689, %s688, 15
        %p691 = scmp.lt.s32.totalorder %s39, 0
        %s692 = scalar_select %p691, %s39, 0
        %s693 = sadd.s32 %s692, %s690
        %s694 = smul.addr %s693, 8
        %s695 = scalar_lea.vmem %s3, %s694
        %s696 = smul.u32 8, %s38
        %s697 = smul.u32 8, %s38
        %p698 = scmp.lt.s32.totalorder %s697, 15
        %s699 = scalar_select %p698, %s697, 15
        %p700 = scmp.lt.s32.totalorder %s39, 0
        %s701 = scalar_select %p700, %s39, 0
        %s702 = sadd.s32 %s701, %s699
        %s703 = scalar_lea.vmem %s4, %s702
        %s704 = smul.u32 8, %s38
        %p705 = scmp.lt.s32.totalorder %s38, 1
        %s706 = scalar_select %p705, %s38, 1
        %s707 = smul.addr %s706, 8
        %s708 = scalar_lea.vmem %s5, %s707
        %s709 = smul.u32 8, %s38
        %s710 = smul.u32 8, %s38
        %p711 = scmp.lt.s32.totalorder %s710, 15
        %s712 = scalar_select %p711, %s710, 15
        %p713 = scmp.lt.s32.totalorder %s39, 0
        %s714 = scalar_select %p713, %s39, 0
        %s715 = sadd.s32 %s714, %s712
        %s716 = scalar_lea.vmem %s7, %s715
        %s717 = smul.u32 8, %s38
        %p718 = scmp.lt.s32.totalorder %s38, 1
        %s719 = scalar_select %p718, %s38, 1
        %s720 = smul.addr %s719, 8
        %s721 = scalar_lea.vmem %s8, %s720
        %p723 = scmp.eq.s32.totalorder %s39, 0
        // Predicated region
        $region89: #{tpu_custom_call.1} parent=71 // pred_check
          %p724 = pneg %p723
        $region90: #{tpu_custom_call.1} parent=71 // pred_check_branch
          %726 = sbr.rel (%p724) target = $region92
        $region91: #{tpu_custom_call.1} parent=71 // pred_region
          %vm727 = vcmask 261120
          %728 = vst.msk [vmem:[#allocation2] sm:$0xff] %vm727, 0.0
          %729 = vst.msk [vmem:[#allocation3] sm:$0xff] %vm727, 0.0
          %730 = vst.msk [vmem:[#allocation4] sm:$0xff] %vm727, 0.0
        $region92: #{tpu_custom_call.1} parent=71 // pred_fallthru
          _
        %v731 = vld [vmem:[%s569] sm:$0xff]
        %v732 = vld [vmem:[%s569 + $0x8] sm:$0xff]
        %v733 = vld [vmem:[%s569 + $0x10] sm:$0xff]
        %v734 = vld [vmem:[%s569 + $0x18] sm:$0xff]
        %v735 = vld [vmem:[%s569 + $0x20] sm:$0xff]
        %v736 = vld [vmem:[%s569 + $0x28] sm:$0xff]
        %v737 = vld [vmem:[%s569 + $0x30] sm:$0xff]
        %v738 = vld [vmem:[%s569 + $0x38] sm:$0xff]
        %v739 = vpack.c.bf16 %v731, %v731
        %v740 = vpack.c.bf16 %v732, %v732
        %v741 = vpack.c.bf16 %v733, %v733
        %v742 = vpack.c.bf16 %v734, %v734
        %v743 = vpack.c.bf16 %v735, %v735
        %v744 = vpack.c.bf16 %v736, %v736
        %v745 = vpack.c.bf16 %v737, %v737
        %v746 = vpack.c.bf16 %v738, %v738
        %v747 = vld [vmem:[%s682] sm:$0x1]
        %v748 = vld [vmem:[%s682 + $0x1] sm:$0x1]
        %v749 = vld [vmem:[%s682 + $0x2] sm:$0x1]
        %v750 = vld [vmem:[%s682 + $0x3] sm:$0x1]
        %v751 = vld [vmem:[%s682 + $0x4] sm:$0x1]
        %v752 = vld [vmem:[%s682 + $0x5] sm:$0x1]
        %v753 = vld [vmem:[%s682 + $0x6] sm:$0x1]
        %v754 = vld [vmem:[%s682 + $0x7] sm:$0x1]
        %v755 = vpack.c.bf16 %v747, %v747
        %v756 = vpack.c.bf16 %v748, %v748
        %v757 = vpack.c.bf16 %v749, %v749
        %v758 = vpack.c.bf16 %v750, %v750
        %v759 = vpack.c.bf16 %v751, %v751
        %v760 = vpack.c.bf16 %v752, %v752
        %v761 = vpack.c.bf16 %v753, %v753
        %v762 = vpack.c.bf16 %v754, %v754
        %vm763 = vcmask 64512
        %v765 = vsel %vm763, %v755, 0
        %vm767 = vcmask 1043456
        %v769 = vsel %vm767, %v739, 0
        %771 = vmatprep.subr.bf16.mxu0 0
        %772 = vmatpush1.bf16.msra.mxu0 %v769
        %773 = vmatprep.subr.bf16.mxu0 0
        %774 = vmatpush1.bf16.msra.mxu0 0
        %775 = vmatprep.subr.bf16.mxu0 0
        %776 = vmatpush1.bf16.msra.mxu0 0
        %777 = vmatprep.subr.bf16.mxu0 0
        %778 = vmatpush1.bf16.msra.mxu0 0
        %779 = vmatprep.subr.bf16.mxu0 0
        %780 = vmatpush1.bf16.msra.mxu0 0
        %781 = vmatprep.subr.bf16.mxu0 0
        %782 = vmatpush1.bf16.msra.mxu0 0
        %783 = vmatprep.subr.bf16.mxu0 0
        %784 = vmatpush1.bf16.msra.mxu0 0
        %785 = vmatprep.subr.bf16.mxu0 0
        %786 = vmatpush1.bf16.msra.mxu0 0
        %787 = vmatprep.subr.bf16.mxu0 0
        %788 = vmatpush1.bf16.msra.mxu0 0
        %789 = vmatprep.subr.bf16.mxu0 0
        %790 = vmatpush1.bf16.msra.mxu0 0
        %791 = vmatprep.subr.bf16.mxu0 0
        %792 = vmatpush1.bf16.msra.mxu0 0
        %793 = vmatprep.subr.bf16.mxu0 0
        %794 = vmatpush1.bf16.msra.mxu0 0
        %795 = vmatprep.subr.bf16.mxu0 0
        %796 = vmatpush1.bf16.msra.mxu0 0
        %797 = vmatprep.subr.bf16.mxu0 0
        %798 = vmatpush1.bf16.msra.mxu0 0
        %799 = vmatprep.subr.bf16.mxu0 0
        %800 = vmatpush1.bf16.msra.mxu0 0
        %801 = vmatprep.subr.bf16.mxu0 0
        %802 = vmatpush1.bf16.msra.mxu0 0
        %803 = vmatprep.mubr.bf16.mxu0 0
        %804 = vmatmul.mubr.bf16.gmra.mrb[0].mxu0 %v765
        %v805 = vpop.f32.mrb[0].mxu0
        %v806 = vadd.f32 0.0, %v805
        %v807 = vpop.f32.mrb[0].mxu0
        %v808 = vpop.f32.mrb[0].mxu0
        %v809 = vpop.f32.mrb[0].mxu0
        %810 = vdwg.mxu0
        %v812 = vsel %vm763, %v756, 0
        %v815 = vsel %vm767, %v740, 0
        %817 = vmatprep.subr.bf16.mxu0 0
        %818 = vmatpush1.bf16.msra.mxu0 %v815
        %819 = vmatprep.subr.bf16.mxu0 0
        %820 = vmatpush1.bf16.msra.mxu0 0
        %821 = vmatprep.subr.bf16.mxu0 0
        %822 = vmatpush1.bf16.msra.mxu0 0
        %823 = vmatprep.subr.bf16.mxu0 0
        %824 = vmatpush1.bf16.msra.mxu0 0
        %825 = vmatprep.subr.bf16.mxu0 0
        %826 = vmatpush1.bf16.msra.mxu0 0
        %827 = vmatprep.subr.bf16.mxu0 0
        %828 = vmatpush1.bf16.msra.mxu0 0
        %829 = vmatprep.subr.bf16.mxu0 0
        %830 = vmatpush1.bf16.msra.mxu0 0
        %831 = vmatprep.subr.bf16.mxu0 0
        %832 = vmatpush1.bf16.msra.mxu0 0
        %833 = vmatprep.subr.bf16.mxu0 0
        %834 = vmatpush1.bf16.msra.mxu0 0
        %835 = vmatprep.subr.bf16.mxu0 0
        %836 = vmatpush1.bf16.msra.mxu0 0
        %837 = vmatprep.subr.bf16.mxu0 0
        %838 = vmatpush1.bf16.msra.mxu0 0
        %839 = vmatprep.subr.bf16.mxu0 0
        %840 = vmatpush1.bf16.msra.mxu0 0
        %841 = vmatprep.subr.bf16.mxu0 0
        %842 = vmatpush1.bf16.msra.mxu0 0
        %843 = vmatprep.subr.bf16.mxu0 0
        %844 = vmatpush1.bf16.msra.mxu0 0
        %845 = vmatprep.subr.bf16.mxu0 0
        %846 = vmatpush1.bf16.msra.mxu0 0
        %847 = vmatprep.subr.bf16.mxu0 0
        %848 = vmatpush1.bf16.msra.mxu0 0
        %849 = vmatprep.mubr.bf16.mxu0 0
        %850 = vmatmul.mubr.bf16.gmra.mrb[0].mxu0 %v812
        %v851 = vpop.f32.mrb[0].mxu0
        %v852 = vadd.f32 0.0, %v851
        %v853 = vpop.f32.mrb[0].mxu0
        %v854 = vpop.f32.mrb[0].mxu0
        %v855 = vpop.f32.mrb[0].mxu0
        %856 = vdwg.mxu0
        %v858 = vsel %vm763, %v757, 0
        %v861 = vsel %vm767, %v741, 0
        %863 = vmatprep.subr.bf16.mxu0 0
        %864 = vmatpush1.bf16.msra.mxu0 %v861
        %865 = vmatprep.subr.bf16.mxu0 0
        %866 = vmatpush1.bf16.msra.mxu0 0
        %867 = vmatprep.subr.bf16.mxu0 0
        %868 = vmatpush1.bf16.msra.mxu0 0
        %869 = vmatprep.subr.bf16.mxu0 0
        %870 = vmatpush1.bf16.msra.mxu0 0
        %871 = vmatprep.subr.bf16.mxu0 0
        %872 = vmatpush1.bf16.msra.mxu0 0
        %873 = vmatprep.subr.bf16.mxu0 0
        %874 = vmatpush1.bf16.msra.mxu0 0
        %875 = vmatprep.subr.bf16.mxu0 0
        %876 = vmatpush1.bf16.msra.mxu0 0
        %877 = vmatprep.subr.bf16.mxu0 0
        %878 = vmatpush1.bf16.msra.mxu0 0
        %879 = vmatprep.subr.bf16.mxu0 0
        %880 = vmatpush1.bf16.msra.mxu0 0
        %881 = vmatprep.subr.bf16.mxu0 0
        %882 = vmatpush1.bf16.msra.mxu0 0
        %883 = vmatprep.subr.bf16.mxu0 0
        %884 = vmatpush1.bf16.msra.mxu0 0
        %885 = vmatprep.subr.bf16.mxu0 0
        %886 = vmatpush1.bf16.msra.mxu0 0
        %887 = vmatprep.subr.bf16.mxu0 0
        %888 = vmatpush1.bf16.msra.mxu0 0
        %889 = vmatprep.subr.bf16.mxu0 0
        %890 = vmatpush1.bf16.msra.mxu0 0
        %891 = vmatprep.subr.bf16.mxu0 0
        %892 = vmatpush1.bf16.msra.mxu0 0
        %893 = vmatprep.subr.bf16.mxu0 0
        %894 = vmatpush1.bf16.msra.mxu0 0
        %895 = vmatprep.mubr.bf16.mxu0 0
        %896 = vmatmul.mubr.bf16.gmra.mrb[0].mxu0 %v858
        %v897 = vpop.f32.mrb[0].mxu0
        %v898 = vadd.f32 0.0, %v897
        %v899 = vpop.f32.mrb[0].mxu0
        %v900 = vpop.f32.mrb[0].mxu0
        %v901 = vpop.f32.mrb[0].mxu0
        %902 = vdwg.mxu0
        %v904 = vsel %vm763, %v758, 0
        %v907 = vsel %vm767, %v742, 0
        %909 = vmatprep.subr.bf16.mxu0 0
        %910 = vmatpush1.bf16.msra.mxu0 %v907
        %911 = vmatprep.subr.bf16.mxu0 0
        %912 = vmatpush1.bf16.msra.mxu0 0
        %913 = vmatprep.subr.bf16.mxu0 0
        %914 = vmatpush1.bf16.msra.mxu0 0
        %915 = vmatprep.subr.bf16.mxu0 0
        %916 = vmatpush1.bf16.msra.mxu0 0
        %917 = vmatprep.subr.bf16.mxu0 0
        %918 = vmatpush1.bf16.msra.mxu0 0
        %919 = vmatprep.subr.bf16.mxu0 0
        %920 = vmatpush1.bf16.msra.mxu0 0
        %921 = vmatprep.subr.bf16.mxu0 0
        %922 = vmatpush1.bf16.msra.mxu0 0
        %923 = vmatprep.subr.bf16.mxu0 0
        %924 = vmatpush1.bf16.msra.mxu0 0
        %925 = vmatprep.subr.bf16.mxu0 0
        %926 = vmatpush1.bf16.msra.mxu0 0
        %927 = vmatprep.subr.bf16.mxu0 0
        %928 = vmatpush1.bf16.msra.mxu0 0
        %929 = vmatprep.subr.bf16.mxu0 0
        %930 = vmatpush1.bf16.msra.mxu0 0
        %931 = vmatprep.subr.bf16.mxu0 0
        %932 = vmatpush1.bf16.msra.mxu0 0
        %933 = vmatprep.subr.bf16.mxu0 0
        %934 = vmatpush1.bf16.msra.mxu0 0
        %935 = vmatprep.subr.bf16.mxu0 0
        %936 = vmatpush1.bf16.msra.mxu0 0
        %937 = vmatprep.subr.bf16.mxu0 0
        %938 = vmatpush1.bf16.msra.mxu0 0
        %939 = vmatprep.subr.bf16.mxu0 0
        %940 = vmatpush1.bf16.msra.mxu0 0
        %941 = vmatprep.mubr.bf16.mxu0 0
        %942 = vmatmul.mubr.bf16.gmra.mrb[0].mxu0 %v904
        %v943 = vpop.f32.mrb[0].mxu0
        %v944 = vadd.f32 0.0, %v943
        %v945 = vpop.f32.mrb[0].mxu0
        %v946 = vpop.f32.mrb[0].mxu0
        %v947 = vpop.f32.mrb[0].mxu0
        %948 = vdwg.mxu0
        %v950 = vsel %vm763, %v759, 0
        %v953 = vsel %vm767, %v743, 0
        %955 = vmatprep.subr.bf16.mxu0 0
        %956 = vmatpush1.bf16.msra.mxu0 %v953
        %957 = vmatprep.subr.bf16.mxu0 0
        %958 = vmatpush1.bf16.msra.mxu0 0
        %959 = vmatprep.subr.bf16.mxu0 0
        %960 = vmatpush1.bf16.msra.mxu0 0
        %961 = vmatprep.subr.bf16.mxu0 0
        %962 = vmatpush1.bf16.msra.mxu0 0
        %963 = vmatprep.subr.bf16.mxu0 0
        %964 = vmatpush1.bf16.msra.mxu0 0
        %965 = vmatprep.subr.bf16.mxu0 0
        %966 = vmatpush1.bf16.msra.mxu0 0
        %967 = vmatprep.subr.bf16.mxu0 0
        %968 = vmatpush1.bf16.msra.mxu0 0
        %969 = vmatprep.subr.bf16.mxu0 0
        %970 = vmatpush1.bf16.msra.mxu0 0
        %971 = vmatprep.subr.bf16.mxu0 0
        %972 = vmatpush1.bf16.msra.mxu0 0
        %973 = vmatprep.subr.bf16.mxu0 0
        %974 = vmatpush1.bf16.msra.mxu0 0
        %975 = vmatprep.subr.bf16.mxu0 0
        %976 = vmatpush1.bf16.msra.mxu0 0
        %977 = vmatprep.subr.bf16.mxu0 0
        %978 = vmatpush1.bf16.msra.mxu0 0
        %979 = vmatprep.subr.bf16.mxu0 0
        %980 = vmatpush1.bf16.msra.mxu0 0
        %981 = vmatprep.subr.bf16.mxu0 0
        %982 = vmatpush1.bf16.msra.mxu0 0
        %983 = vmatprep.subr.bf16.mxu0 0
        %984 = vmatpush1.bf16.msra.mxu0 0
        %985 = vmatprep.subr.bf16.mxu0 0
        %986 = vmatpush1.bf16.msra.mxu0 0
        %987 = vmatprep.mubr.bf16.mxu0 0
        %988 = vmatmul.mubr.bf16.gmra.mrb[0].mxu0 %v950
        %v989 = vpop.f32.mrb[0].mxu0
        %v990 = vadd.f32 0.0, %v989
        %v991 = vpop.f32.mrb[0].mxu0
        %v992 = vpop.f32.mrb[0].mxu0
        %v993 = vpop.f32.mrb[0].mxu0
        %994 = vdwg.mxu0
        %v996 = vsel %vm763, %v760, 0
        %v999 = vsel %vm767, %v744, 0
        %1001 = vmatprep.subr.bf16.mxu0 0
        %1002 = vmatpush1.bf16.msra.mxu0 %v999
        %1003 = vmatprep.subr.bf16.mxu0 0
        %1004 = vmatpush1.bf16.msra.mxu0 0
        %1005 = vmatprep.subr.bf16.mxu0 0
        %1006 = vmatpush1.bf16.msra.mxu0 0
        %1007 = vmatprep.subr.bf16.mxu0 0
        %1008 = vmatpush1.bf16.msra.mxu0 0
        %1009 = vmatprep.subr.bf16.mxu0 0
        %1010 = vmatpush1.bf16.msra.mxu0 0
        %1011 = vmatprep.subr.bf16.mxu0 0
        %1012 = vmatpush1.bf16.msra.mxu0 0
        %1013 = vmatprep.subr.bf16.mxu0 0
        %1014 = vmatpush1.bf16.msra.mxu0 0
        %1015 = vmatprep.subr.bf16.mxu0 0
        %1016 = vmatpush1.bf16.msra.mxu0 0
        %1017 = vmatprep.subr.bf16.mxu0 0
        %1018 = vmatpush1.bf16.msra.mxu0 0
        %1019 = vmatprep.subr.bf16.mxu0 0
        %1020 = vmatpush1.bf16.msra.mxu0 0
        %1021 = vmatprep.subr.bf16.mxu0 0
        %1022 = vmatpush1.bf16.msra.mxu0 0
        %1023 = vmatprep.subr.bf16.mxu0 0
        %1024 = vmatpush1.bf16.msra.mxu0 0
        %1025 = vmatprep.subr.bf16.mxu0 0
        %1026 = vmatpush1.bf16.msra.mxu0 0
        %1027 = vmatprep.subr.bf16.mxu0 0
        %1028 = vmatpush1.bf16.msra.mxu0 0
        %1029 = vmatprep.subr.bf16.mxu0 0
        %1030 = vmatpush1.bf16.msra.mxu0 0
        %1031 = vmatprep.subr.bf16.mxu0 0
        %1032 = vmatpush1.bf16.msra.mxu0 0
        %1033 = vmatprep.mubr.bf16.mxu0 0
        %1034 = vmatmul.mubr.bf16.gmra.mrb[0].mxu0 %v996
        %v1035 = vpop.f32.mrb[0].mxu0
        %v1036 = vadd.f32 0.0, %v1035
        %v1037 = vpop.f32.mrb[0].mxu0
        %v1038 = vpop.f32.mrb[0].mxu0
        %v1039 = vpop.f32.mrb[0].mxu0
        %1040 = vdwg.mxu0
        %v1042 = vsel %vm763, %v761, 0
        %v1045 = vsel %vm767, %v745, 0
        %1047 = vmatprep.subr.bf16.mxu0 0
        %1048 = vmatpush1.bf16.msra.mxu0 %v1045
        %1049 = vmatprep.subr.bf16.mxu0 0
        %1050 = vmatpush1.bf16.msra.mxu0 0
        %1051 = vmatprep.subr.bf16.mxu0 0
        %1052 = vmatpush1.bf16.msra.mxu0 0
        %1053 = vmatprep.subr.bf16.mxu0 0
        %1054 = vmatpush1.bf16.msra.mxu0 0
        %1055 = vmatprep.subr.bf16.mxu0 0
        %1056 = vmatpush1.bf16.msra.mxu0 0
        %1057 = vmatprep.subr.bf16.mxu0 0
        %1058 = vmatpush1.bf16.msra.mxu0 0
        %1059 = vmatprep.subr.bf16.mxu0 0
        %1060 = vmatpush1.bf16.msra.mxu0 0
        %1061 = vmatprep.subr.bf16.mxu0 0
        %1062 = vmatpush1.bf16.msra.mxu0 0
        %1063 = vmatprep.subr.bf16.mxu0 0
        %1064 = vmatpush1.bf16.msra.mxu0 0
        %1065 = vmatprep.subr.bf16.mxu0 0
        %1066 = vmatpush1.bf16.msra.mxu0 0
        %1067 = vmatprep.subr.bf16.mxu0 0
        %1068 = vmatpush1.bf16.msra.mxu0 0
        %1069 = vmatprep.subr.bf16.mxu0 0
        %1070 = vmatpush1.bf16.msra.mxu0 0
        %1071 = vmatprep.subr.bf16.mxu0 0
        %1072 = vmatpush1.bf16.msra.mxu0 0
        %1073 = vmatprep.subr.bf16.mxu0 0
        %1074 = vmatpush1.bf16.msra.mxu0 0
        %1075 = vmatprep.subr.bf16.mxu0 0
        %1076 = vmatpush1.bf16.msra.mxu0 0
        %1077 = vmatprep.subr.bf16.mxu0 0
        %1078 = vmatpush1.bf16.msra.mxu0 0
        %1079 = vmatprep.mubr.bf16.mxu0 0
        %1080 = vmatmul.mubr.bf16.gmra.mrb[0].mxu0 %v1042
        %v1081 = vpop.f32.mrb[0].mxu0
        %v1082 = vadd.f32 0.0, %v1081
        %v1083 = vpop.f32.mrb[0].mxu0
        %v1084 = vpop.f32.mrb[0].mxu0
        %v1085 = vpop.f32.mrb[0].mxu0
        %1086 = vdwg.mxu0
        %v1088 = vsel %vm763, %v762, 0
        %v1091 = vsel %vm767, %v746, 0
        %1093 = vmatprep.subr.bf16.mxu0 0
        %1094 = vmatpush1.bf16.msra.mxu0 %v1091
        %1095 = vmatprep.subr.bf16.mxu0 0
        %1096 = vmatpush1.bf16.msra.mxu0 0
        %1097 = vmatprep.subr.bf16.mxu0 0
        %1098 = vmatpush1.bf16.msra.mxu0 0
        %1099 = vmatprep.subr.bf16.mxu0 0
        %1100 = vmatpush1.bf16.msra.mxu0 0
        %1101 = vmatprep.subr.bf16.mxu0 0
        %1102 = vmatpush1.bf16.msra.mxu0 0
        %1103 = vmatprep.subr.bf16.mxu0 0
        %1104 = vmatpush1.bf16.msra.mxu0 0
        %1105 = vmatprep.subr.bf16.mxu0 0
        %1106 = vmatpush1.bf16.msra.mxu0 0
        %1107 = vmatprep.subr.bf16.mxu0 0
        %1108 = vmatpush1.bf16.msra.mxu0 0
        %1109 = vmatprep.subr.bf16.mxu0 0
        %1110 = vmatpush1.bf16.msra.mxu0 0
        %1111 = vmatprep.subr.bf16.mxu0 0
        %1112 = vmatpush1.bf16.msra.mxu0 0
        %1113 = vmatprep.subr.bf16.mxu0 0
        %1114 = vmatpush1.bf16.msra.mxu0 0
        %1115 = vmatprep.subr.bf16.mxu0 0
        %1116 = vmatpush1.bf16.msra.mxu0 0
        %1117 = vmatprep.subr.bf16.mxu0 0
        %1118 = vmatpush1.bf16.msra.mxu0 0
        %1119 = vmatprep.subr.bf16.mxu0 0
        %1120 = vmatpush1.bf16.msra.mxu0 0
        %1121 = vmatprep.subr.bf16.mxu0 0
        %1122 = vmatpush1.bf16.msra.mxu0 0
        %1123 = vmatprep.subr.bf16.mxu0 0
        %1124 = vmatpush1.bf16.msra.mxu0 0
        %1125 = vmatprep.mubr.bf16.mxu0 0
        %1126 = vmatmul.mubr.bf16.gmra.mrb[0].mxu0 %v1088
        %v1127 = vpop.f32.mrb[0].mxu0
        %v1128 = vadd.f32 0.0, %v1127
        %v1129 = vpop.f32.mrb[0].mxu0
        %v1130 = vpop.f32.mrb[0].mxu0
        %v1131 = vpop.f32.mrb[0].mxu0
        %1132 = vdwg.mxu0
        %v1133 = vld [vmem:[#allocation2] sm:$0xff]
        %v1142 = vrot.slane %v852, 7
        %vm1143 = vcmask 1041409
        %v1144 = vsel %vm1143, %v1142, %v806
        %v1145 = vrot.slane %v898, 6
        %vm1146 = vcmask 1042434
        %v1147 = vsel %vm1146, %v1145, %v1144
        %v1148 = vrot.slane %v944, 5
        %vm1149 = vcmask 1043459
        %v1150 = vsel %vm1149, %v1148, %v1147
        %v1151 = vrot.slane %v990, 4
        %vm1152 = vcmask 1044484
        %v1153 = vsel %vm1152, %v1151, %v1150
        %v1154 = vrot.slane %v1036, 3
        %vm1155 = vcmask 1045509
        %v1156 = vsel %vm1155, %v1154, %v1153
        %v1157 = vrot.slane %v1082, 2
        %vm1158 = vcmask 1046534
        %v1159 = vsel %vm1158, %v1157, %v1156
        %v1160 = vrot.slane %v1128, 1
        %vm1161 = vcmask 1047559
        %v1162 = vsel %vm1161, %v1160, %v1159
        %v1164 = vadd.f32 %v1133, %v1162
        %vm1165 = vcmask 261120
        %1166 = vst.msk [vmem:[#allocation2] sm:$0xff] %vm1165, %v1164
        %v1167 = vld [vmem:[%s695] sm:$0xff]
        %v1168 = vld [vmem:[%s695 + $0x8] sm:$0xff]
        %v1169 = vld [vmem:[%s695 + $0x10] sm:$0xff]
        %v1170 = vld [vmem:[%s695 + $0x18] sm:$0xff]
        %v1171 = vld [vmem:[%s695 + $0x20] sm:$0xff]
        %v1172 = vld [vmem:[%s695 + $0x28] sm:$0xff]
        %v1173 = vld [vmem:[%s695 + $0x30] sm:$0xff]
        %v1174 = vld [vmem:[%s695 + $0x38] sm:$0xff]
        %v1175 = vpack.c.bf16 %v1167, %v1167
        %v1176 = vpack.c.bf16 %v1168, %v1168
        %v1177 = vpack.c.bf16 %v1169, %v1169
        %v1178 = vpack.c.bf16 %v1170, %v1170
        %v1179 = vpack.c.bf16 %v1171, %v1171
        %v1180 = vpack.c.bf16 %v1172, %v1172
        %v1181 = vpack.c.bf16 %v1173, %v1173
        %v1182 = vpack.c.bf16 %v1174, %v1174
        %v1183 = vld [vmem:[%s703] sm:$0x1]
        %v1184 = vld [vmem:[%s703 + $0x1] sm:$0x1]
        %v1185 = vld [vmem:[%s703 + $0x2] sm:$0x1]
        %v1186 = vld [vmem:[%s703 + $0x3] sm:$0x1]
        %v1187 = vld [vmem:[%s703 + $0x4] sm:$0x1]
        %v1188 = vld [vmem:[%s703 + $0x5] sm:$0x1]
        %v1189 = vld [vmem:[%s703 + $0x6] sm:$0x1]
        %v1190 = vld [vmem:[%s703 + $0x7] sm:$0x1]
        %v1191 = vpack.c.bf16 %v1183, %v1183
        %v1192 = vpack.c.bf16 %v1184, %v1184
        %v1193 = vpack.c.bf16 %v1185, %v1185
        %v1194 = vpack.c.bf16 %v1186, %v1186
        %v1195 = vpack.c.bf16 %v1187, %v1187
        %v1196 = vpack.c.bf16 %v1188, %v1188
        %v1197 = vpack.c.bf16 %v1189, %v1189
        %v1198 = vpack.c.bf16 %v1190, %v1190
        %v1200 = vsel %vm763, %v1191, 0
        %v1203 = vsel %vm767, %v1175, 0
        %1205 = vmatprep.subr.bf16.mxu0 0
        %1206 = vmatpush1.bf16.msra.mxu0 %v1203
        %1207 = vmatprep.subr.bf16.mxu0 0
        %1208 = vmatpush1.bf16.msra.mxu0 0
        %1209 = vmatprep.subr.bf16.mxu0 0
        %1210 = vmatpush1.bf16.msra.mxu0 0
        %1211 = vmatprep.subr.bf16.mxu0 0
        %1212 = vmatpush1.bf16.msra.mxu0 0
        %1213 = vmatprep.subr.bf16.mxu0 0
        %1214 = vmatpush1.bf16.msra.mxu0 0
        %1215 = vmatprep.subr.bf16.mxu0 0
        %1216 = vmatpush1.bf16.msra.mxu0 0
        %1217 = vmatprep.subr.bf16.mxu0 0
        %1218 = vmatpush1.bf16.msra.mxu0 0
        %1219 = vmatprep.subr.bf16.mxu0 0
        %1220 = vmatpush1.bf16.msra.mxu0 0
        %1221 = vmatprep.subr.bf16.mxu0 0
        %1222 = vmatpush1.bf16.msra.mxu0 0
        %1223 = vmatprep.subr.bf16.mxu0 0
        %1224 = vmatpush1.bf16.msra.mxu0 0
        %1225 = vmatprep.subr.bf16.mxu0 0
        %1226 = vmatpush1.bf16.msra.mxu0 0
        %1227 = vmatprep.subr.bf16.mxu0 0
        %1228 = vmatpush1.bf16.msra.mxu0 0
        %1229 = vmatprep.subr.bf16.mxu0 0
        %1230 = vmatpush1.bf16.msra.mxu0 0
        %1231 = vmatprep.subr.bf16.mxu0 0
        %1232 = vmatpush1.bf16.msra.mxu0 0
        %1233 = vmatprep.subr.bf16.mxu0 0
        %1234 = vmatpush1.bf16.msra.mxu0 0
        %1235 = vmatprep.subr.bf16.mxu0 0
        %1236 = vmatpush1.bf16.msra.mxu0 0
        %1237 = vmatprep.mubr.bf16.mxu0 0
        %1238 = vmatmul.mubr.bf16.gmra.mrb[0].mxu0 %v1200
        %v1239 = vpop.f32.mrb[0].mxu0
        %v1240 = vadd.f32 0.0, %v1239
        %v1241 = vpop.f32.mrb[0].mxu0
        %v1242 = vpop.f32.mrb[0].mxu0
        %v1243 = vpop.f32.mrb[0].mxu0
        %1244 = vdwg.mxu0
        %v1246 = vsel %vm763, %v1192, 0
        %v1249 = vsel %vm767, %v1176, 0
        %1251 = vmatprep.subr.bf16.mxu0 0
        %1252 = vmatpush1.bf16.msra.mxu0 %v1249
        %1253 = vmatprep.subr.bf16.mxu0 0
        %1254 = vmatpush1.bf16.msra.mxu0 0
        %1255 = vmatprep.subr.bf16.mxu0 0
        %1256 = vmatpush1.bf16.msra.mxu0 0
        %1257 = vmatprep.subr.bf16.mxu0 0
        %1258 = vmatpush1.bf16.msra.mxu0 0
        %1259 = vmatprep.subr.bf16.mxu0 0
        %1260 = vmatpush1.bf16.msra.mxu0 0
        %1261 = vmatprep.subr.bf16.mxu0 0
        %1262 = vmatpush1.bf16.msra.mxu0 0
        %1263 = vmatprep.subr.bf16.mxu0 0
        %1264 = vmatpush1.bf16.msra.mxu0 0
        %1265 = vmatprep.subr.bf16.mxu0 0
        %1266 = vmatpush1.bf16.msra.mxu0 0
        %1267 = vmatprep.subr.bf16.mxu0 0
        %1268 = vmatpush1.bf16.msra.mxu0 0
        %1269 = vmatprep.subr.bf16.mxu0 0
        %1270 = vmatpush1.bf16.msra.mxu0 0
        %1271 = vmatprep.subr.bf16.mxu0 0
        %1272 = vmatpush1.bf16.msra.mxu0 0
        %1273 = vmatprep.subr.bf16.mxu0 0
        %1274 = vmatpush1.bf16.msra.mxu0 0
        %1275 = vmatprep.subr.bf16.mxu0 0
        %1276 = vmatpush1.bf16.msra.mxu0 0
        %1277 = vmatprep.subr.bf16.mxu0 0
        %1278 = vmatpush1.bf16.msra.mxu0 0
        %1279 = vmatprep.subr.bf16.mxu0 0
        %1280 = vmatpush1.bf16.msra.mxu0 0
        %1281 = vmatprep.subr.bf16.mxu0 0
        %1282 = vmatpush1.bf16.msra.mxu0 0
        %1283 = vmatprep.mubr.bf16.mxu0 0
        %1284 = vmatmul.mubr.bf16.gmra.mrb[0].mxu0 %v1246
        %v1285 = vpop.f32.mrb[0].mxu0
        %v1286 = vadd.f32 0.0, %v1285
        %v1287 = vpop.f32.mrb[0].mxu0
        %v1288 = vpop.f32.mrb[0].mxu0
        %v1289 = vpop.f32.mrb[0].mxu0
        %1290 = vdwg.mxu0
        %v1292 = vsel %vm763, %v1193, 0
        %v1295 = vsel %vm767, %v1177, 0
        %1297 = vmatprep.subr.bf16.mxu0 0
        %1298 = vmatpush1.bf16.msra.mxu0 %v1295
        %1299 = vmatprep.subr.bf16.mxu0 0
        %1300 = vmatpush1.bf16.msra.mxu0 0
        %1301 = vmatprep.subr.bf16.mxu0 0
        %1302 = vmatpush1.bf16.msra.mxu0 0
        %1303 = vmatprep.subr.bf16.mxu0 0
        %1304 = vmatpush1.bf16.msra.mxu0 0
        %1305 = vmatprep.subr.bf16.mxu0 0
        %1306 = vmatpush1.bf16.msra.mxu0 0
        %1307 = vmatprep.subr.bf16.mxu0 0
        %1308 = vmatpush1.bf16.msra.mxu0 0
        %1309 = vmatprep.subr.bf16.mxu0 0
        %1310 = vmatpush1.bf16.msra.mxu0 0
        %1311 = vmatprep.subr.bf16.mxu0 0
        %1312 = vmatpush1.bf16.msra.mxu0 0
        %1313 = vmatprep.subr.bf16.mxu0 0
        %1314 = vmatpush1.bf16.msra.mxu0 0
        %1315 = vmatprep.subr.bf16.mxu0 0
        %1316 = vmatpush1.bf16.msra.mxu0 0
        %1317 = vmatprep.subr.bf16.mxu0 0
        %1318 = vmatpush1.bf16.msra.mxu0 0
        %1319 = vmatprep.subr.bf16.mxu0 0
        %1320 = vmatpush1.bf16.msra.mxu0 0
        %1321 = vmatprep.subr.bf16.mxu0 0
        %1322 = vmatpush1.bf16.msra.mxu0 0
        %1323 = vmatprep.subr.bf16.mxu0 0
        %1324 = vmatpush1.bf16.msra.mxu0 0
        %1325 = vmatprep.subr.bf16.mxu0 0
        %1326 = vmatpush1.bf16.msra.mxu0 0
        %1327 = vmatprep.subr.bf16.mxu0 0
        %1328 = vmatpush1.bf16.msra.mxu0 0
        %1329 = vmatprep.mubr.bf16.mxu0 0
        %1330 = vmatmul.mubr.bf16.gmra.mrb[0].mxu0 %v1292
        %v1331 = vpop.f32.mrb[0].mxu0
        %v1332 = vadd.f32 0.0, %v1331
        %v1333 = vpop.f32.mrb[0].mxu0
        %v1334 = vpop.f32.mrb[0].mxu0
        %v1335 = vpop.f32.mrb[0].mxu0
        %1336 = vdwg.mxu0
        %v1338 = vsel %vm763, %v1194, 0
        %v1341 = vsel %vm767, %v1178, 0
        %1343 = vmatprep.subr.bf16.mxu0 0
        %1344 = vmatpush1.bf16.msra.mxu0 %v1341
        %1345 = vmatprep.subr.bf16.mxu0 0
        %1346 = vmatpush1.bf16.msra.mxu0 0
        %1347 = vmatprep.subr.bf16.mxu0 0
        %1348 = vmatpush1.bf16.msra.mxu0 0
        %1349 = vmatprep.subr.bf16.mxu0 0
        %1350 = vmatpush1.bf16.msra.mxu0 0
        %1351 = vmatprep.subr.bf16.mxu0 0
        %1352 = vmatpush1.bf16.msra.mxu0 0
        %1353 = vmatprep.subr.bf16.mxu0 0
        %1354 = vmatpush1.bf16.msra.mxu0 0
        %1355 = vmatprep.subr.bf16.mxu0 0
        %1356 = vmatpush1.bf16.msra.mxu0 0
        %1357 = vmatprep.subr.bf16.mxu0 0
        %1358 = vmatpush1.bf16.msra.mxu0 0
        %1359 = vmatprep.subr.bf16.mxu0 0
        %1360 = vmatpush1.bf16.msra.mxu0 0
        %1361 = vmatprep.subr.bf16.mxu0 0
        %1362 = vmatpush1.bf16.msra.mxu0 0
        %1363 = vmatprep.subr.bf16.mxu0 0
        %1364 = vmatpush1.bf16.msra.mxu0 0
        %1365 = vmatprep.subr.bf16.mxu0 0
        %1366 = vmatpush1.bf16.msra.mxu0 0
        %1367 = vmatprep.subr.bf16.mxu0 0
        %1368 = vmatpush1.bf16.msra.mxu0 0
        %1369 = vmatprep.subr.bf16.mxu0 0
        %1370 = vmatpush1.bf16.msra.mxu0 0
        %1371 = vmatprep.subr.bf16.mxu0 0
        %1372 = vmatpush1.bf16.msra.mxu0 0
        %1373 = vmatprep.subr.bf16.mxu0 0
        %1374 = vmatpush1.bf16.msra.mxu0 0
        %1375 = vmatprep.mubr.bf16.mxu0 0
        %1376 = vmatmul.mubr.bf16.gmra.mrb[0].mxu0 %v1338
        %v1377 = vpop.f32.mrb[0].mxu0
        %v1378 = vadd.f32 0.0, %v1377
        %v1379 = vpop.f32.mrb[0].mxu0
        %v1380 = vpop.f32.mrb[0].mxu0
        %v1381 = vpop.f32.mrb[0].mxu0
        %1382 = vdwg.mxu0
        %v1384 = vsel %vm763, %v1195, 0
        %v1387 = vsel %vm767, %v1179, 0
        %1389 = vmatprep.subr.bf16.mxu0 0
        %1390 = vmatpush1.bf16.msra.mxu0 %v1387
        %1391 = vmatprep.subr.bf16.mxu0 0
        %1392 = vmatpush1.bf16.msra.mxu0 0
        %1393 = vmatprep.subr.bf16.mxu0 0
        %1394 = vmatpush1.bf16.msra.mxu0 0
        %1395 = vmatprep.subr.bf16.mxu0 0
        %1396 = vmatpush1.bf16.msra.mxu0 0
        %1397 = vmatprep.subr.bf16.mxu0 0
        %1398 = vmatpush1.bf16.msra.mxu0 0
        %1399 = vmatprep.subr.bf16.mxu0 0
        %1400 = vmatpush1.bf16.msra.mxu0 0
        %1401 = vmatprep.subr.bf16.mxu0 0
        %1402 = vmatpush1.bf16.msra.mxu0 0
        %1403 = vmatprep.subr.bf16.mxu0 0
        %1404 = vmatpush1.bf16.msra.mxu0 0
        %1405 = vmatprep.subr.bf16.mxu0 0
        %1406 = vmatpush1.bf16.msra.mxu0 0
        %1407 = vmatprep.subr.bf16.mxu0 0
        %1408 = vmatpush1.bf16.msra.mxu0 0
        %1409 = vmatprep.subr.bf16.mxu0 0
        %1410 = vmatpush1.bf16.msra.mxu0 0
        %1411 = vmatprep.subr.bf16.mxu0 0
        %1412 = vmatpush1.bf16.msra.mxu0 0
        %1413 = vmatprep.subr.bf16.mxu0 0
        %1414 = vmatpush1.bf16.msra.mxu0 0
        %1415 = vmatprep.subr.bf16.mxu0 0
        %1416 = vmatpush1.bf16.msra.mxu0 0
        %1417 = vmatprep.subr.bf16.mxu0 0
        %1418 = vmatpush1.bf16.msra.mxu0 0
        %1419 = vmatprep.subr.bf16.mxu0 0
        %1420 = vmatpush1.bf16.msra.mxu0 0
        %1421 = vmatprep.mubr.bf16.mxu0 0
        %1422 = vmatmul.mubr.bf16.gmra.mrb[0].mxu0 %v1384
        %v1423 = vpop.f32.mrb[0].mxu0
        %v1424 = vadd.f32 0.0, %v1423
        %v1425 = vpop.f32.mrb[0].mxu0
        %v1426 = vpop.f32.mrb[0].mxu0
        %v1427 = vpop.f32.mrb[0].mxu0
        %1428 = vdwg.mxu0
        %v1430 = vsel %vm763, %v1196, 0
        %v1433 = vsel %vm767, %v1180, 0
        %1435 = vmatprep.subr.bf16.mxu0 0
        %1436 = vmatpush1.bf16.msra.mxu0 %v1433
        %1437 = vmatprep.subr.bf16.mxu0 0
        %1438 = vmatpush1.bf16.msra.mxu0 0
        %1439 = vmatprep.subr.bf16.mxu0 0
        %1440 = vmatpush1.bf16.msra.mxu0 0
        %1441 = vmatprep.subr.bf16.mxu0 0
        %1442 = vmatpush1.bf16.msra.mxu0 0
        %1443 = vmatprep.subr.bf16.mxu0 0
        %1444 = vmatpush1.bf16.msra.mxu0 0
        %1445 = vmatprep.subr.bf16.mxu0 0
        %1446 = vmatpush1.bf16.msra.mxu0 0
        %1447 = vmatprep.subr.bf16.mxu0 0
        %1448 = vmatpush1.bf16.msra.mxu0 0
        %1449 = vmatprep.subr.bf16.mxu0 0
        %1450 = vmatpush1.bf16.msra.mxu0 0
        %1451 = vmatprep.subr.bf16.mxu0 0
        %1452 = vmatpush1.bf16.msra.mxu0 0
        %1453 = vmatprep.subr.bf16.mxu0 0
        %1454 = vmatpush1.bf16.msra.mxu0 0
        %1455 = vmatprep.subr.bf16.mxu0 0
        %1456 = vmatpush1.bf16.msra.mxu0 0
        %1457 = vmatprep.subr.bf16.mxu0 0
        %1458 = vmatpush1.bf16.msra.mxu0 0
        %1459 = vmatprep.subr.bf16.mxu0 0
        %1460 = vmatpush1.bf16.msra.mxu0 0
        %1461 = vmatprep.subr.bf16.mxu0 0
        %1462 = vmatpush1.bf16.msra.mxu0 0
        %1463 = vmatprep.subr.bf16.mxu0 0
        %1464 = vmatpush1.bf16.msra.mxu0 0
        %1465 = vmatprep.subr.bf16.mxu0 0
        %1466 = vmatpush1.bf16.msra.mxu0 0
        %1467 = vmatprep.mubr.bf16.mxu0 0
        %1468 = vmatmul.mubr.bf16.gmra.mrb[0].mxu0 %v1430
        %v1469 = vpop.f32.mrb[0].mxu0
        %v1470 = vadd.f32 0.0, %v1469
        %v1471 = vpop.f32.mrb[0].mxu0
        %v1472 = vpop.f32.mrb[0].mxu0
        %v1473 = vpop.f32.mrb[0].mxu0
        %1474 = vdwg.mxu0
        %v1476 = vsel %vm763, %v1197, 0
        %v1479 = vsel %vm767, %v1181, 0
        %1481 = vmatprep.subr.bf16.mxu0 0
        %1482 = vmatpush1.bf16.msra.mxu0 %v1479
        %1483 = vmatprep.subr.bf16.mxu0 0
        %1484 = vmatpush1.bf16.msra.mxu0 0
        %1485 = vmatprep.subr.bf16.mxu0 0
        %1486 = vmatpush1.bf16.msra.mxu0 0
        %1487 = vmatprep.subr.bf16.mxu0 0
        %1488 = vmatpush1.bf16.msra.mxu0 0
        %1489 = vmatprep.subr.bf16.mxu0 0
        %1490 = vmatpush1.bf16.msra.mxu0 0
        %1491 = vmatprep.subr.bf16.mxu0 0
        %1492 = vmatpush1.bf16.msra.mxu0 0
        %1493 = vmatprep.subr.bf16.mxu0 0
        %1494 = vmatpush1.bf16.msra.mxu0 0
        %1495 = vmatprep.subr.bf16.mxu0 0
        %1496 = vmatpush1.bf16.msra.mxu0 0
        %1497 = vmatprep.subr.bf16.mxu0 0
        %1498 = vmatpush1.bf16.msra.mxu0 0
        %1499 = vmatprep.subr.bf16.mxu0 0
        %1500 = vmatpush1.bf16.msra.mxu0 0
        %1501 = vmatprep.subr.bf16.mxu0 0
        %1502 = vmatpush1.bf16.msra.mxu0 0
        %1503 = vmatprep.subr.bf16.mxu0 0
        %1504 = vmatpush1.bf16.msra.mxu0 0
        %1505 = vmatprep.subr.bf16.mxu0 0
        %1506 = vmatpush1.bf16.msra.mxu0 0
        %1507 = vmatprep.subr.bf16.mxu0 0
        %1508 = vmatpush1.bf16.msra.mxu0 0
        %1509 = vmatprep.subr.bf16.mxu0 0
        %1510 = vmatpush1.bf16.msra.mxu0 0
        %1511 = vmatprep.subr.bf16.mxu0 0
        %1512 = vmatpush1.bf16.msra.mxu0 0
        %1513 = vmatprep.mubr.bf16.mxu0 0
        %1514 = vmatmul.mubr.bf16.gmra.mrb[0].mxu0 %v1476
        %v1515 = vpop.f32.mrb[0].mxu0
        %v1516 = vadd.f32 0.0, %v1515
        %v1517 = vpop.f32.mrb[0].mxu0
        %v1518 = vpop.f32.mrb[0].mxu0
        %v1519 = vpop.f32.mrb[0].mxu0
        %1520 = vdwg.mxu0
        %v1522 = vsel %vm763, %v1198, 0
        %v1525 = vsel %vm767, %v1182, 0
        %1527 = vmatprep.subr.bf16.mxu0 0
        %1528 = vmatpush1.bf16.msra.mxu0 %v1525
        %1529 = vmatprep.subr.bf16.mxu0 0
        %1530 = vmatpush1.bf16.msra.mxu0 0
        %1531 = vmatprep.subr.bf16.mxu0 0
        %1532 = vmatpush1.bf16.msra.mxu0 0
        %1533 = vmatprep.subr.bf16.mxu0 0
        %1534 = vmatpush1.bf16.msra.mxu0 0
        %1535 = vmatprep.subr.bf16.mxu0 0
        %1536 = vmatpush1.bf16.msra.mxu0 0
        %1537 = vmatprep.subr.bf16.mxu0 0
        %1538 = vmatpush1.bf16.msra.mxu0 0
        %1539 = vmatprep.subr.bf16.mxu0 0
        %1540 = vmatpush1.bf16.msra.mxu0 0
        %1541 = vmatprep.subr.bf16.mxu0 0
        %1542 = vmatpush1.bf16.msra.mxu0 0
        %1543 = vmatprep.subr.bf16.mxu0 0
        %1544 = vmatpush1.bf16.msra.mxu0 0
        %1545 = vmatprep.subr.bf16.mxu0 0
        %1546 = vmatpush1.bf16.msra.mxu0 0
        %1547 = vmatprep.subr.bf16.mxu0 0
        %1548 = vmatpush1.bf16.msra.mxu0 0
        %1549 = vmatprep.subr.bf16.mxu0 0
        %1550 = vmatpush1.bf16.msra.mxu0 0
        %1551 = vmatprep.subr.bf16.mxu0 0
        %1552 = vmatpush1.bf16.msra.mxu0 0
        %1553 = vmatprep.subr.bf16.mxu0 0
        %1554 = vmatpush1.bf16.msra.mxu0 0
        %1555 = vmatprep.subr.bf16.mxu0 0
        %1556 = vmatpush1.bf16.msra.mxu0 0
        %1557 = vmatprep.subr.bf16.mxu0 0
        %1558 = vmatpush1.bf16.msra.mxu0 0
        %1559 = vmatprep.mubr.bf16.mxu0 0
        %1560 = vmatmul.mubr.bf16.gmra.mrb[0].mxu0 %v1522
        %v1561 = vpop.f32.mrb[0].mxu0
        %v1562 = vadd.f32 0.0, %v1561
        %v1563 = vpop.f32.mrb[0].mxu0
        %v1564 = vpop.f32.mrb[0].mxu0
        %v1565 = vpop.f32.mrb[0].mxu0
        %1566 = vdwg.mxu0
        %v1567 = vld [vmem:[#allocation3] sm:$0xff]
        %v1576 = vrot.slane %v1286, 7
        %v1577 = vsel %vm1143, %v1576, %v1240
        %v1578 = vrot.slane %v1332, 6
        %v1579 = vsel %vm1146, %v1578, %v1577
        %v1580 = vrot.slane %v1378, 5
        %v1581 = vsel %vm1149, %v1580, %v1579
        %v1582 = vrot.slane %v1424, 4
        %v1583 = vsel %vm1152, %v1582, %v1581
        %v1584 = vrot.slane %v1470, 3
        %v1585 = vsel %vm1155, %v1584, %v1583
        %v1586 = vrot.slane %v1516, 2
        %v1587 = vsel %vm1158, %v1586, %v1585
        %v1588 = vrot.slane %v1562, 1
        %v1589 = vsel %vm1161, %v1588, %v1587
        %v1591 = vadd.f32 %v1567, %v1589
        %1592 = vst.msk [vmem:[#allocation3] sm:$0xff] %vm1165, %v1591
        %v1593 = vld [vmem:[%s578] sm:$0xff]
        %v1594 = vld [vmem:[%s578 + $0x8] sm:$0xff]
        %v1595 = vld [vmem:[%s578 + $0x10] sm:$0xff]
        %v1596 = vld [vmem:[%s578 + $0x18] sm:$0xff]
        %v1597 = vld [vmem:[%s578 + $0x20] sm:$0xff]
        %v1598 = vld [vmem:[%s578 + $0x28] sm:$0xff]
        %v1599 = vld [vmem:[%s578 + $0x30] sm:$0xff]
        %v1600 = vld [vmem:[%s578 + $0x38] sm:$0xff]
        %v1601 = vpack.c.bf16 %v1593, %v1593
        %v1602 = vpack.c.bf16 %v1594, %v1594
        %v1603 = vpack.c.bf16 %v1595, %v1595
        %v1604 = vpack.c.bf16 %v1596, %v1596
        %v1605 = vpack.c.bf16 %v1597, %v1597
        %v1606 = vpack.c.bf16 %v1598, %v1598
        %v1607 = vpack.c.bf16 %v1599, %v1599
        %v1608 = vpack.c.bf16 %v1600, %v1600
        %v1609 = vld [vmem:[%s716] sm:$0x1]
        %v1610 = vld [vmem:[%s716 + $0x1] sm:$0x1]
        %v1611 = vld [vmem:[%s716 + $0x2] sm:$0x1]
        %v1612 = vld [vmem:[%s716 + $0x3] sm:$0x1]
        %v1613 = vld [vmem:[%s716 + $0x4] sm:$0x1]
        %v1614 = vld [vmem:[%s716 + $0x5] sm:$0x1]
        %v1615 = vld [vmem:[%s716 + $0x6] sm:$0x1]
        %v1616 = vld [vmem:[%s716 + $0x7] sm:$0x1]
        %v1617 = vpack.c.bf16 %v1609, %v1609
        %v1618 = vpack.c.bf16 %v1610, %v1610
        %v1619 = vpack.c.bf16 %v1611, %v1611
        %v1620 = vpack.c.bf16 %v1612, %v1612
        %v1621 = vpack.c.bf16 %v1613, %v1613
        %v1622 = vpack.c.bf16 %v1614, %v1614
        %v1623 = vpack.c.bf16 %v1615, %v1615
        %v1624 = vpack.c.bf16 %v1616, %v1616
        %v1626 = vsel %vm763, %v1617, 0
        %v1629 = vsel %vm767, %v1601, 0
        %1631 = vmatprep.subr.bf16.mxu0 0
        %1632 = vmatpush1.bf16.msra.mxu0 %v1629
        %1633 = vmatprep.subr.bf16.mxu0 0
        %1634 = vmatpush1.bf16.msra.mxu0 0
        %1635 = vmatprep.subr.bf16.mxu0 0
        %1636 = vmatpush1.bf16.msra.mxu0 0
        %1637 = vmatprep.subr.bf16.mxu0 0
        %1638 = vmatpush1.bf16.msra.mxu0 0
        %1639 = vmatprep.subr.bf16.mxu0 0
        %1640 = vmatpush1.bf16.msra.mxu0 0
        %1641 = vmatprep.subr.bf16.mxu0 0
        %1642 = vmatpush1.bf16.msra.mxu0 0
        %1643 = vmatprep.subr.bf16.mxu0 0
        %1644 = vmatpush1.bf16.msra.mxu0 0
        %1645 = vmatprep.subr.bf16.mxu0 0
        %1646 = vmatpush1.bf16.msra.mxu0 0
        %1647 = vmatprep.subr.bf16.mxu0 0
        %1648 = vmatpush1.bf16.msra.mxu0 0
        %1649 = vmatprep.subr.bf16.mxu0 0
        %1650 = vmatpush1.bf16.msra.mxu0 0
        %1651 = vmatprep.subr.bf16.mxu0 0
        %1652 = vmatpush1.bf16.msra.mxu0 0
        %1653 = vmatprep.subr.bf16.mxu0 0
        %1654 = vmatpush1.bf16.msra.mxu0 0
        %1655 = vmatprep.subr.bf16.mxu0 0
        %1656 = vmatpush1.bf16.msra.mxu0 0
        %1657 = vmatprep.subr.bf16.mxu0 0
        %1658 = vmatpush1.bf16.msra.mxu0 0
        %1659 = vmatprep.subr.bf16.mxu0 0
        %1660 = vmatpush1.bf16.msra.mxu0 0
        %1661 = vmatprep.subr.bf16.mxu0 0
        %1662 = vmatpush1.bf16.msra.mxu0 0
        %1663 = vmatprep.mubr.bf16.mxu0 0
        %1664 = vmatmul.mubr.bf16.gmra.mrb[0].mxu0 %v1626
        %v1665 = vpop.f32.mrb[0].mxu0
        %v1666 = vadd.f32 0.0, %v1665
        %v1667 = vpop.f32.mrb[0].mxu0
        %v1668 = vpop.f32.mrb[0].mxu0
        %v1669 = vpop.f32.mrb[0].mxu0
        %1670 = vdwg.mxu0
        %v1672 = vsel %vm763, %v1618, 0
        %v1675 = vsel %vm767, %v1602, 0
        %1677 = vmatprep.subr.bf16.mxu0 0
        %1678 = vmatpush1.bf16.msra.mxu0 %v1675
        %1679 = vmatprep.subr.bf16.mxu0 0
        %1680 = vmatpush1.bf16.msra.mxu0 0
        %1681 = vmatprep.subr.bf16.mxu0 0
        %1682 = vmatpush1.bf16.msra.mxu0 0
        %1683 = vmatprep.subr.bf16.mxu0 0
        %1684 = vmatpush1.bf16.msra.mxu0 0
        %1685 = vmatprep.subr.bf16.mxu0 0
        %1686 = vmatpush1.bf16.msra.mxu0 0
        %1687 = vmatprep.subr.bf16.mxu0 0
        %1688 = vmatpush1.bf16.msra.mxu0 0
        %1689 = vmatprep.subr.bf16.mxu0 0
        %1690 = vmatpush1.bf16.msra.mxu0 0
        %1691 = vmatprep.subr.bf16.mxu0 0
        %1692 = vmatpush1.bf16.msra.mxu0 0
        %1693 = vmatprep.subr.bf16.mxu0 0
        %1694 = vmatpush1.bf16.msra.mxu0 0
        %1695 = vmatprep.subr.bf16.mxu0 0
        %1696 = vmatpush1.bf16.msra.mxu0 0
        %1697 = vmatprep.subr.bf16.mxu0 0
        %1698 = vmatpush1.bf16.msra.mxu0 0
        %1699 = vmatprep.subr.bf16.mxu0 0
        %1700 = vmatpush1.bf16.msra.mxu0 0
        %1701 = vmatprep.subr.bf16.mxu0 0
        %1702 = vmatpush1.bf16.msra.mxu0 0
        %1703 = vmatprep.subr.bf16.mxu0 0
        %1704 = vmatpush1.bf16.msra.mxu0 0
        %1705 = vmatprep.subr.bf16.mxu0 0
        %1706 = vmatpush1.bf16.msra.mxu0 0
        %1707 = vmatprep.subr.bf16.mxu0 0
        %1708 = vmatpush1.bf16.msra.mxu0 0
        %1709 = vmatprep.mubr.bf16.mxu0 0
        %1710 = vmatmul.mubr.bf16.gmra.mrb[0].mxu0 %v1672
        %v1711 = vpop.f32.mrb[0].mxu0
        %v1712 = vadd.f32 0.0, %v1711
        %v1713 = vpop.f32.mrb[0].mxu0
        %v1714 = vpop.f32.mrb[0].mxu0
        %v1715 = vpop.f32.mrb[0].mxu0
        %1716 = vdwg.mxu0
        %v1718 = vsel %vm763, %v1619, 0
        %v1721 = vsel %vm767, %v1603, 0
        %1723 = vmatprep.subr.bf16.mxu0 0
        %1724 = vmatpush1.bf16.msra.mxu0 %v1721
        %1725 = vmatprep.subr.bf16.mxu0 0
        %1726 = vmatpush1.bf16.msra.mxu0 0
        %1727 = vmatprep.subr.bf16.mxu0 0
        %1728 = vmatpush1.bf16.msra.mxu0 0
        %1729 = vmatprep.subr.bf16.mxu0 0
        %1730 = vmatpush1.bf16.msra.mxu0 0
        %1731 = vmatprep.subr.bf16.mxu0 0
        %1732 = vmatpush1.bf16.msra.mxu0 0
        %1733 = vmatprep.subr.bf16.mxu0 0
        %1734 = vmatpush1.bf16.msra.mxu0 0
        %1735 = vmatprep.subr.bf16.mxu0 0
        %1736 = vmatpush1.bf16.msra.mxu0 0
        %1737 = vmatprep.subr.bf16.mxu0 0
        %1738 = vmatpush1.bf16.msra.mxu0 0
        %1739 = vmatprep.subr.bf16.mxu0 0
        %1740 = vmatpush1.bf16.msra.mxu0 0
        %1741 = vmatprep.subr.bf16.mxu0 0
        %1742 = vmatpush1.bf16.msra.mxu0 0
        %1743 = vmatprep.subr.bf16.mxu0 0
        %1744 = vmatpush1.bf16.msra.mxu0 0
        %1745 = vmatprep.subr.bf16.mxu0 0
        %1746 = vmatpush1.bf16.msra.mxu0 0
        %1747 = vmatprep.subr.bf16.mxu0 0
        %1748 = vmatpush1.bf16.msra.mxu0 0
        %1749 = vmatprep.subr.bf16.mxu0 0
        %1750 = vmatpush1.bf16.msra.mxu0 0
        %1751 = vmatprep.subr.bf16.mxu0 0
        %1752 = vmatpush1.bf16.msra.mxu0 0
        %1753 = vmatprep.subr.bf16.mxu0 0
        %1754 = vmatpush1.bf16.msra.mxu0 0
        %1755 = vmatprep.mubr.bf16.mxu0 0
        %1756 = vmatmul.mubr.bf16.gmra.mrb[0].mxu0 %v1718
        %v1757 = vpop.f32.mrb[0].mxu0
        %v1758 = vadd.f32 0.0, %v1757
        %v1759 = vpop.f32.mrb[0].mxu0
        %v1760 = vpop.f32.mrb[0].mxu0
        %v1761 = vpop.f32.mrb[0].mxu0
        %1762 = vdwg.mxu0
        %v1764 = vsel %vm763, %v1620, 0
        %v1767 = vsel %vm767, %v1604, 0
        %1769 = vmatprep.subr.bf16.mxu0 0
        %1770 = vmatpush1.bf16.msra.mxu0 %v1767
        %1771 = vmatprep.subr.bf16.mxu0 0
        %1772 = vmatpush1.bf16.msra.mxu0 0
        %1773 = vmatprep.subr.bf16.mxu0 0
        %1774 = vmatpush1.bf16.msra.mxu0 0
        %1775 = vmatprep.subr.bf16.mxu0 0
        %1776 = vmatpush1.bf16.msra.mxu0 0
        %1777 = vmatprep.subr.bf16.mxu0 0
        %1778 = vmatpush1.bf16.msra.mxu0 0
        %1779 = vmatprep.subr.bf16.mxu0 0
        %1780 = vmatpush1.bf16.msra.mxu0 0
        %1781 = vmatprep.subr.bf16.mxu0 0
        %1782 = vmatpush1.bf16.msra.mxu0 0
        %1783 = vmatprep.subr.bf16.mxu0 0
        %1784 = vmatpush1.bf16.msra.mxu0 0
        %1785 = vmatprep.subr.bf16.mxu0 0
        %1786 = vmatpush1.bf16.msra.mxu0 0
        %1787 = vmatprep.subr.bf16.mxu0 0
        %1788 = vmatpush1.bf16.msra.mxu0 0
        %1789 = vmatprep.subr.bf16.mxu0 0
        %1790 = vmatpush1.bf16.msra.mxu0 0
        %1791 = vmatprep.subr.bf16.mxu0 0
        %1792 = vmatpush1.bf16.msra.mxu0 0
        %1793 = vmatprep.subr.bf16.mxu0 0
        %1794 = vmatpush1.bf16.msra.mxu0 0
        %1795 = vmatprep.subr.bf16.mxu0 0
        %1796 = vmatpush1.bf16.msra.mxu0 0
        %1797 = vmatprep.subr.bf16.mxu0 0
        %1798 = vmatpush1.bf16.msra.mxu0 0
        %1799 = vmatprep.subr.bf16.mxu0 0
        %1800 = vmatpush1.bf16.msra.mxu0 0
        %1801 = vmatprep.mubr.bf16.mxu0 0
        %1802 = vmatmul.mubr.bf16.gmra.mrb[0].mxu0 %v1764
        %v1803 = vpop.f32.mrb[0].mxu0
        %v1804 = vadd.f32 0.0, %v1803
        %v1805 = vpop.f32.mrb[0].mxu0
        %v1806 = vpop.f32.mrb[0].mxu0
        %v1807 = vpop.f32.mrb[0].mxu0
        %1808 = vdwg.mxu0
        %v1810 = vsel %vm763, %v1621, 0
        %v1813 = vsel %vm767, %v1605, 0
        %1815 = vmatprep.subr.bf16.mxu0 0
        %1816 = vmatpush1.bf16.msra.mxu0 %v1813
        %1817 = vmatprep.subr.bf16.mxu0 0
        %1818 = vmatpush1.bf16.msra.mxu0 0
        %1819 = vmatprep.subr.bf16.mxu0 0
        %1820 = vmatpush1.bf16.msra.mxu0 0
        %1821 = vmatprep.subr.bf16.mxu0 0
        %1822 = vmatpush1.bf16.msra.mxu0 0
        %1823 = vmatprep.subr.bf16.mxu0 0
        %1824 = vmatpush1.bf16.msra.mxu0 0
        %1825 = vmatprep.subr.bf16.mxu0 0
        %1826 = vmatpush1.bf16.msra.mxu0 0
        %1827 = vmatprep.subr.bf16.mxu0 0
        %1828 = vmatpush1.bf16.msra.mxu0 0
        %1829 = vmatprep.subr.bf16.mxu0 0
        %1830 = vmatpush1.bf16.msra.mxu0 0
        %1831 = vmatprep.subr.bf16.mxu0 0
        %1832 = vmatpush1.bf16.msra.mxu0 0
        %1833 = vmatprep.subr.bf16.mxu0 0
        %1834 = vmatpush1.bf16.msra.mxu0 0
        %1835 = vmatprep.subr.bf16.mxu0 0
        %1836 = vmatpush1.bf16.msra.mxu0 0
        %1837 = vmatprep.subr.bf16.mxu0 0
        %1838 = vmatpush1.bf16.msra.mxu0 0
        %1839 = vmatprep.subr.bf16.mxu0 0
        %1840 = vmatpush1.bf16.msra.mxu0 0
        %1841 = vmatprep.subr.bf16.mxu0 0
        %1842 = vmatpush1.bf16.msra.mxu0 0
        %1843 = vmatprep.subr.bf16.mxu0 0
        %1844 = vmatpush1.bf16.msra.mxu0 0
        %1845 = vmatprep.subr.bf16.mxu0 0
        %1846 = vmatpush1.bf16.msra.mxu0 0
        %1847 = vmatprep.mubr.bf16.mxu0 0
        %1848 = vmatmul.mubr.bf16.gmra.mrb[0].mxu0 %v1810
        %v1849 = vpop.f32.mrb[0].mxu0
        %v1850 = vadd.f32 0.0, %v1849
        %v1851 = vpop.f32.mrb[0].mxu0
        %v1852 = vpop.f32.mrb[0].mxu0
        %v1853 = vpop.f32.mrb[0].mxu0
        %1854 = vdwg.mxu0
        %v1856 = vsel %vm763, %v1622, 0
        %v1859 = vsel %vm767, %v1606, 0
        %1861 = vmatprep.subr.bf16.mxu0 0
        %1862 = vmatpush1.bf16.msra.mxu0 %v1859
        %1863 = vmatprep.subr.bf16.mxu0 0
        %1864 = vmatpush1.bf16.msra.mxu0 0
        %1865 = vmatprep.subr.bf16.mxu0 0
        %1866 = vmatpush1.bf16.msra.mxu0 0
        %1867 = vmatprep.subr.bf16.mxu0 0
        %1868 = vmatpush1.bf16.msra.mxu0 0
        %1869 = vmatprep.subr.bf16.mxu0 0
        %1870 = vmatpush1.bf16.msra.mxu0 0
        %1871 = vmatprep.subr.bf16.mxu0 0
        %1872 = vmatpush1.bf16.msra.mxu0 0
        %1873 = vmatprep.subr.bf16.mxu0 0
        %1874 = vmatpush1.bf16.msra.mxu0 0
        %1875 = vmatprep.subr.bf16.mxu0 0
        %1876 = vmatpush1.bf16.msra.mxu0 0
        %1877 = vmatprep.subr.bf16.mxu0 0
        %1878 = vmatpush1.bf16.msra.mxu0 0
        %1879 = vmatprep.subr.bf16.mxu0 0
        %1880 = vmatpush1.bf16.msra.mxu0 0
        %1881 = vmatprep.subr.bf16.mxu0 0
        %1882 = vmatpush1.bf16.msra.mxu0 0
        %1883 = vmatprep.subr.bf16.mxu0 0
        %1884 = vmatpush1.bf16.msra.mxu0 0
        %1885 = vmatprep.subr.bf16.mxu0 0
        %1886 = vmatpush1.bf16.msra.mxu0 0
        %1887 = vmatprep.subr.bf16.mxu0 0
        %1888 = vmatpush1.bf16.msra.mxu0 0
        %1889 = vmatprep.subr.bf16.mxu0 0
        %1890 = vmatpush1.bf16.msra.mxu0 0
        %1891 = vmatprep.subr.bf16.mxu0 0
        %1892 = vmatpush1.bf16.msra.mxu0 0
        %1893 = vmatprep.mubr.bf16.mxu0 0
        %1894 = vmatmul.mubr.bf16.gmra.mrb[0].mxu0 %v1856
        %v1895 = vpop.f32.mrb[0].mxu0
        %v1896 = vadd.f32 0.0, %v1895
        %v1897 = vpop.f32.mrb[0].mxu0
        %v1898 = vpop.f32.mrb[0].mxu0
        %v1899 = vpop.f32.mrb[0].mxu0
        %1900 = vdwg.mxu0
        %v1902 = vsel %vm763, %v1623, 0
        %v1905 = vsel %vm767, %v1607, 0
        %1907 = vmatprep.subr.bf16.mxu0 0
        %1908 = vmatpush1.bf16.msra.mxu0 %v1905
        %1909 = vmatprep.subr.bf16.mxu0 0
        %1910 = vmatpush1.bf16.msra.mxu0 0
        %1911 = vmatprep.subr.bf16.mxu0 0
        %1912 = vmatpush1.bf16.msra.mxu0 0
        %1913 = vmatprep.subr.bf16.mxu0 0
        %1914 = vmatpush1.bf16.msra.mxu0 0
        %1915 = vmatprep.subr.bf16.mxu0 0
        %1916 = vmatpush1.bf16.msra.mxu0 0
        %1917 = vmatprep.subr.bf16.mxu0 0
        %1918 = vmatpush1.bf16.msra.mxu0 0
        %1919 = vmatprep.subr.bf16.mxu0 0
        %1920 = vmatpush1.bf16.msra.mxu0 0
        %1921 = vmatprep.subr.bf16.mxu0 0
        %1922 = vmatpush1.bf16.msra.mxu0 0
        %1923 = vmatprep.subr.bf16.mxu0 0
        %1924 = vmatpush1.bf16.msra.mxu0 0
        %1925 = vmatprep.subr.bf16.mxu0 0
        %1926 = vmatpush1.bf16.msra.mxu0 0
        %1927 = vmatprep.subr.bf16.mxu0 0
        %1928 = vmatpush1.bf16.msra.mxu0 0
        %1929 = vmatprep.subr.bf16.mxu0 0
        %1930 = vmatpush1.bf16.msra.mxu0 0
        %1931 = vmatprep.subr.bf16.mxu0 0
        %1932 = vmatpush1.bf16.msra.mxu0 0
        %1933 = vmatprep.subr.bf16.mxu0 0
        %1934 = vmatpush1.bf16.msra.mxu0 0
        %1935 = vmatprep.subr.bf16.mxu0 0
        %1936 = vmatpush1.bf16.msra.mxu0 0
        %1937 = vmatprep.subr.bf16.mxu0 0
        %1938 = vmatpush1.bf16.msra.mxu0 0
        %1939 = vmatprep.mubr.bf16.mxu0 0
        %1940 = vmatmul.mubr.bf16.gmra.mrb[0].mxu0 %v1902
        %v1941 = vpop.f32.mrb[0].mxu0
        %v1942 = vadd.f32 0.0, %v1941
        %v1943 = vpop.f32.mrb[0].mxu0
        %v1944 = vpop.f32.mrb[0].mxu0
        %v1945 = vpop.f32.mrb[0].mxu0
        %1946 = vdwg.mxu0
        %v1948 = vsel %vm763, %v1624, 0
        %v1951 = vsel %vm767, %v1608, 0
        %1953 = vmatprep.subr.bf16.mxu0 0
        %1954 = vmatpush1.bf16.msra.mxu0 %v1951
        %1955 = vmatprep.subr.bf16.mxu0 0
        %1956 = vmatpush1.bf16.msra.mxu0 0
        %1957 = vmatprep.subr.bf16.mxu0 0
        %1958 = vmatpush1.bf16.msra.mxu0 0
        %1959 = vmatprep.subr.bf16.mxu0 0
        %1960 = vmatpush1.bf16.msra.mxu0 0
        %1961 = vmatprep.subr.bf16.mxu0 0
        %1962 = vmatpush1.bf16.msra.mxu0 0
        %1963 = vmatprep.subr.bf16.mxu0 0
        %1964 = vmatpush1.bf16.msra.mxu0 0
        %1965 = vmatprep.subr.bf16.mxu0 0
        %1966 = vmatpush1.bf16.msra.mxu0 0
        %1967 = vmatprep.subr.bf16.mxu0 0
        %1968 = vmatpush1.bf16.msra.mxu0 0
        %1969 = vmatprep.subr.bf16.mxu0 0
        %1970 = vmatpush1.bf16.msra.mxu0 0
        %1971 = vmatprep.subr.bf16.mxu0 0
        %1972 = vmatpush1.bf16.msra.mxu0 0
        %1973 = vmatprep.subr.bf16.mxu0 0
        %1974 = vmatpush1.bf16.msra.mxu0 0
        %1975 = vmatprep.subr.bf16.mxu0 0
        %1976 = vmatpush1.bf16.msra.mxu0 0
        %1977 = vmatprep.subr.bf16.mxu0 0
        %1978 = vmatpush1.bf16.msra.mxu0 0
        %1979 = vmatprep.subr.bf16.mxu0 0
        %1980 = vmatpush1.bf16.msra.mxu0 0
        %1981 = vmatprep.subr.bf16.mxu0 0
        %1982 = vmatpush1.bf16.msra.mxu0 0
        %1983 = vmatprep.subr.bf16.mxu0 0
        %1984 = vmatpush1.bf16.msra.mxu0 0
        %1985 = vmatprep.mubr.bf16.mxu0 0
        %1986 = vmatmul.mubr.bf16.gmra.mrb[0].mxu0 %v1948
        %v1987 = vpop.f32.mrb[0].mxu0
        %v1988 = vadd.f32 0.0, %v1987
        %v1989 = vpop.f32.mrb[0].mxu0
        %v1990 = vpop.f32.mrb[0].mxu0
        %v1991 = vpop.f32.mrb[0].mxu0
        %1992 = vdwg.mxu0
        %v1993 = vld [vmem:[#allocation4] sm:$0xff]
        %v2002 = vrot.slane %v1712, 7
        %v2003 = vsel %vm1143, %v2002, %v1666
        %v2004 = vrot.slane %v1758, 6
        %v2005 = vsel %vm1146, %v2004, %v2003
        %v2006 = vrot.slane %v1804, 5
        %v2007 = vsel %vm1149, %v2006, %v2005
        %v2008 = vrot.slane %v1850, 4
        %v2009 = vsel %vm1152, %v2008, %v2007
        %v2010 = vrot.slane %v1896, 3
        %v2011 = vsel %vm1155, %v2010, %v2009
        %v2012 = vrot.slane %v1942, 2
        %v2013 = vsel %vm1158, %v2012, %v2011
        %v2014 = vrot.slane %v1988, 1
        %v2015 = vsel %vm1161, %v2014, %v2013
        %v2017 = vadd.f32 %v1993, %v2015
        %2018 = vst.msk [vmem:[#allocation4] sm:$0xff] %vm1165, %v2017
        // Predicated region
        $region93: #{tpu_custom_call.1} parent=71 // pred_check
          %p2019 = pneg %p723
        $region94: #{tpu_custom_call.1} parent=71 // pred_check_branch
          %2021 = sbr.rel (%p2019) target = $region96
        $region95: #{tpu_custom_call.1} parent=71 // pred_region
          %v2022 = vld [vmem:[#allocation2] sm:$0xff]
          %v2023 = vld [vmem:[%s687] sm:$0xff]
          %2025 = vset.pattern.permute.xlu0 0
          %2026 = vperm.xlu0 %2025, %v2023
          %v2027 = vpop.permute.xlu0 %2026
          %v2029 = vrcp.pop %v2027
          %v2030 = vmul.f32 %v2022, %v2029
          %v2031 = vld [vmem:[#allocation3] sm:$0xff]
          %v2032 = vld [vmem:[%s708] sm:$0xff]
          %2034 = vset.pattern.permute.xlu0 0
          %2035 = vperm.xlu0 %2034, %v2032
          %v2036 = vpop.permute.xlu0 %2035
          %v2038 = vrcp.pop %v2036
          %v2039 = vmul.f32 %v2031, %v2038
          %v2040 = vld [vmem:[#allocation4] sm:$0xff]
          %v2041 = vld [vmem:[%s721] sm:$0xff]
          %2043 = vset.pattern.permute.xlu0 0
          %2044 = vperm.xlu0 %2043, %v2041
          %v2045 = vpop.permute.xlu0 %2044
          %v2047 = vrcp.pop %v2045
          %v2048 = vmul.f32 %v2040, %v2047
          %v2049 = vld [vmem:[#allocation10] sm:$0xff]
          %v2050 = vld [vmem:[#allocation10 + $0x8] sm:$0xff]
          %v2051 = vld [vmem:[#allocation10 + $0x10] sm:$0xff]
          %v2052 = vld [vmem:[#allocation10 + $0x18] sm:$0xff]
          %v2053 = vld [vmem:[#allocation10 + $0x20] sm:$0xff]
          %v2054 = vld [vmem:[#allocation10 + $0x28] sm:$0xff]
          %v2055 = vld [vmem:[#allocation10 + $0x30] sm:$0xff]
          %v2056 = vld [vmem:[#allocation10 + $0x38] sm:$0xff]
          %v2058 = vsel %vm1165, %v2039, 0
          %2060 = vmatprep.subr.mxu0 0.0
          %2061 = vmatpush1.msra.mxu0 %v2053
          %2062 = vmatprep.subr.mxu0 0.0
          %2063 = vmatpush1.msra.mxu0 %v2054
          %2064 = vmatprep.subr.mxu0 0.0
          %2065 = vmatpush1.msra.mxu0 %v2055
          %2066 = vmatprep.subr.mxu0 0.0
          %2067 = vmatpush1.msra.mxu0 %v2056
          %2068 = vmatprep.subr.mxu0 0.0
          %2069 = vmatpush1.msra.mxu0 0.0
          %2070 = vmatprep.subr.mxu0 0.0
          %2071 = vmatpush1.msra.mxu0 0.0
          %2072 = vmatprep.subr.mxu0 0.0
          %2073 = vmatpush1.msra.mxu0 0.0
          %2074 = vmatprep.subr.mxu0 0.0
          %2075 = vmatpush1.msra.mxu0 0.0
          %2076 = vmatprep.subr.mxu0 0.0
          %2077 = vmatpush1.msra.mxu0 0.0
          %2078 = vmatprep.subr.mxu0 0.0
          %2079 = vmatpush1.msra.mxu0 0.0
          %2080 = vmatprep.subr.mxu0 0.0
          %2081 = vmatpush1.msra.mxu0 0.0
          %2082 = vmatprep.subr.mxu0 0.0
          %2083 = vmatpush1.msra.mxu0 0.0
          %2084 = vmatprep.subr.mxu0 0.0
          %2085 = vmatpush1.msra.mxu0 0.0
          %2086 = vmatprep.subr.mxu0 0.0
          %2087 = vmatpush1.msra.mxu0 0.0
          %2088 = vmatprep.subr.mxu0 0.0
          %2089 = vmatpush1.msra.mxu0 0.0
          %2090 = vmatprep.subr.mxu0 0.0
          %2091 = vmatpush1.msra.mxu0 0.0
          %2092 = vmatprep.subr.mxu0 0.0
          %2093 = vmatpush1.msra.mxu0 0.0
          %2094 = vmatprep.subr.mxu0 0.0
          %2095 = vmatpush1.msra.mxu0 0.0
          %2096 = vmatprep.subr.mxu0 0.0
          %2097 = vmatpush1.msra.mxu0 0.0
          %2098 = vmatprep.subr.mxu0 0.0
          %2099 = vmatpush1.msra.mxu0 0.0
          %2100 = vmatprep.subr.mxu0 0.0
          %2101 = vmatpush1.msra.mxu0 0.0
          %2102 = vmatprep.subr.mxu0 0.0
          %2103 = vmatpush1.msra.mxu0 0.0
          %2104 = vmatprep.subr.mxu0 0.0
          %2105 = vmatpush1.msra.mxu0 0.0
          %2106 = vmatprep.subr.mxu0 0.0
          %2107 = vmatpush1.msra.mxu0 0.0
          %2108 = vmatprep.subr.mxu0 0.0
          %2109 = vmatpush1.msra.mxu0 0.0
          %2110 = vmatprep.subr.mxu0 0.0
          %2111 = vmatpush1.msra.mxu0 0.0
          %2112 = vmatprep.subr.mxu0 0.0
          %2113 = vmatpush1.msra.mxu0 0.0
          %2114 = vmatprep.subr.mxu0 0.0
          %2115 = vmatpush1.msra.mxu0 0.0
          %2116 = vmatprep.subr.mxu0 0.0
          %2117 = vmatpush1.msra.mxu0 0.0
          %2118 = vmatprep.subr.mxu0 0.0
          %2119 = vmatpush1.msra.mxu0 0.0
          %2120 = vmatprep.subr.mxu0 0.0
          %2121 = vmatpush1.msra.mxu0 0.0
          %2122 = vmatprep.subr.mxu0 0.0
          %2123 = vmatpush1.msra.mxu0 0.0
          %2124 = vmatprep.mubr.f32.mxu0 0.0
          %2125 = vmatmul.mubr.f32.gmra.mrb[0].mxu0 %v2058
          %v2126 = vpop.f32.mrb[0].mxu0
          %v2127 = vadd.f32 0.0, %v2126
          %v2128 = vpop.f32.mrb[0].mxu0
          %2129 = vdwg.mxu0
          %v2131 = vsel %vm1165, %v2030, 0
          %2133 = vmatprep.subr.mxu0 0.0
          %2134 = vmatpush1.msra.mxu0 %v2049
          %2135 = vmatprep.subr.mxu0 0.0
          %2136 = vmatpush1.msra.mxu0 %v2050
          %2137 = vmatprep.subr.mxu0 0.0
          %2138 = vmatpush1.msra.mxu0 %v2051
          %2139 = vmatprep.subr.mxu0 0.0
          %2140 = vmatpush1.msra.mxu0 %v2052
          %2141 = vmatprep.subr.mxu0 0.0
          %2142 = vmatpush1.msra.mxu0 0.0
          %2143 = vmatprep.subr.mxu0 0.0
          %2144 = vmatpush1.msra.mxu0 0.0
          %2145 = vmatprep.subr.mxu0 0.0
          %2146 = vmatpush1.msra.mxu0 0.0
          %2147 = vmatprep.subr.mxu0 0.0
          %2148 = vmatpush1.msra.mxu0 0.0
          %2149 = vmatprep.subr.mxu0 0.0
          %2150 = vmatpush1.msra.mxu0 0.0
          %2151 = vmatprep.subr.mxu0 0.0
          %2152 = vmatpush1.msra.mxu0 0.0
          %2153 = vmatprep.subr.mxu0 0.0
          %2154 = vmatpush1.msra.mxu0 0.0
          %2155 = vmatprep.subr.mxu0 0.0
          %2156 = vmatpush1.msra.mxu0 0.0
          %2157 = vmatprep.subr.mxu0 0.0
          %2158 = vmatpush1.msra.mxu0 0.0
          %2159 = vmatprep.subr.mxu0 0.0
          %2160 = vmatpush1.msra.mxu0 0.0
          %2161 = vmatprep.subr.mxu0 0.0
          %2162 = vmatpush1.msra.mxu0 0.0
          %2163 = vmatprep.subr.mxu0 0.0
          %2164 = vmatpush1.msra.mxu0 0.0
          %2165 = vmatprep.subr.mxu0 0.0
          %2166 = vmatpush1.msra.mxu0 0.0
          %2167 = vmatprep.subr.mxu0 0.0
          %2168 = vmatpush1.msra.mxu0 0.0
          %2169 = vmatprep.subr.mxu0 0.0
          %2170 = vmatpush1.msra.mxu0 0.0
          %2171 = vmatprep.subr.mxu0 0.0
          %2172 = vmatpush1.msra.mxu0 0.0
          %2173 = vmatprep.subr.mxu0 0.0
          %2174 = vmatpush1.msra.mxu0 0.0
          %2175 = vmatprep.subr.mxu0 0.0
          %2176 = vmatpush1.msra.mxu0 0.0
          %2177 = vmatprep.subr.mxu0 0.0
          %2178 = vmatpush1.msra.mxu0 0.0
          %2179 = vmatprep.subr.mxu0 0.0
          %2180 = vmatpush1.msra.mxu0 0.0
          %2181 = vmatprep.subr.mxu0 0.0
          %2182 = vmatpush1.msra.mxu0 0.0
          %2183 = vmatprep.subr.mxu0 0.0
          %2184 = vmatpush1.msra.mxu0 0.0
          %2185 = vmatprep.subr.mxu0 0.0
          %2186 = vmatpush1.msra.mxu0 0.0
          %2187 = vmatprep.subr.mxu0 0.0
          %2188 = vmatpush1.msra.mxu0 0.0
          %2189 = vmatprep.subr.mxu0 0.0
          %2190 = vmatpush1.msra.mxu0 0.0
          %2191 = vmatprep.subr.mxu0 0.0
          %2192 = vmatpush1.msra.mxu0 0.0
          %2193 = vmatprep.subr.mxu0 0.0
          %2194 = vmatpush1.msra.mxu0 0.0
          %2195 = vmatprep.subr.mxu0 0.0
          %2196 = vmatpush1.msra.mxu0 0.0
          %2197 = vmatprep.mubr.f32.mxu0 0.0
          %2198 = vmatmul.mubr.f32.gmra.mrb[0].mxu0 %v2131
          %v2199 = vpop.f32.mrb[0].mxu0
          %v2200 = vadd.f32 %v2127, %v2199
          %v2201 = vpop.f32.mrb[0].mxu0
          %2202 = vdwg.mxu0
          %v2203 = vld [vmem:[#allocation10 + $0x40] sm:$0xff]
          %v2204 = vld [vmem:[#allocation10 + $0x48] sm:$0xff]
          %v2205 = vld [vmem:[#allocation10 + $0x50] sm:$0xff]
          %v2206 = vld [vmem:[#allocation10 + $0x58] sm:$0xff]
          %v2208 = vsel %vm1165, %v2048, 0
          %2210 = vmatprep.subr.mxu0 0.0
          %2211 = vmatpush1.msra.mxu0 %v2203
          %2212 = vmatprep.subr.mxu0 0.0
          %2213 = vmatpush1.msra.mxu0 %v2204
          %2214 = vmatprep.subr.mxu0 0.0
          %2215 = vmatpush1.msra.mxu0 %v2205
          %2216 = vmatprep.subr.mxu0 0.0
          %2217 = vmatpush1.msra.mxu0 %v2206
          %2218 = vmatprep.subr.mxu0 0.0
          %2219 = vmatpush1.msra.mxu0 0.0
          %2220 = vmatprep.subr.mxu0 0.0
          %2221 = vmatpush1.msra.mxu0 0.0
          %2222 = vmatprep.subr.mxu0 0.0
          %2223 = vmatpush1.msra.mxu0 0.0
          %2224 = vmatprep.subr.mxu0 0.0
          %2225 = vmatpush1.msra.mxu0 0.0
          %2226 = vmatprep.subr.mxu0 0.0
          %2227 = vmatpush1.msra.mxu0 0.0
          %2228 = vmatprep.subr.mxu0 0.0
          %2229 = vmatpush1.msra.mxu0 0.0
          %2230 = vmatprep.subr.mxu0 0.0
          %2231 = vmatpush1.msra.mxu0 0.0
          %2232 = vmatprep.subr.mxu0 0.0
          %2233 = vmatpush1.msra.mxu0 0.0
          %2234 = vmatprep.subr.mxu0 0.0
          %2235 = vmatpush1.msra.mxu0 0.0
          %2236 = vmatprep.subr.mxu0 0.0
          %2237 = vmatpush1.msra.mxu0 0.0
          %2238 = vmatprep.subr.mxu0 0.0
          %2239 = vmatpush1.msra.mxu0 0.0
          %2240 = vmatprep.subr.mxu0 0.0
          %2241 = vmatpush1.msra.mxu0 0.0
          %2242 = vmatprep.subr.mxu0 0.0
          %2243 = vmatpush1.msra.mxu0 0.0
          %2244 = vmatprep.subr.mxu0 0.0
          %2245 = vmatpush1.msra.mxu0 0.0
          %2246 = vmatprep.subr.mxu0 0.0
          %2247 = vmatpush1.msra.mxu0 0.0
          %2248 = vmatprep.subr.mxu0 0.0
          %2249 = vmatpush1.msra.mxu0 0.0
          %2250 = vmatprep.subr.mxu0 0.0
          %2251 = vmatpush1.msra.mxu0 0.0
          %2252 = vmatprep.subr.mxu0 0.0
          %2253 = vmatpush1.msra.mxu0 0.0
          %2254 = vmatprep.subr.mxu0 0.0
          %2255 = vmatpush1.msra.mxu0 0.0
          %2256 = vmatprep.subr.mxu0 0.0
          %2257 = vmatpush1.msra.mxu0 0.0
          %2258 = vmatprep.subr.mxu0 0.0
          %2259 = vmatpush1.msra.mxu0 0.0
          %2260 = vmatprep.subr.mxu0 0.0
          %2261 = vmatpush1.msra.mxu0 0.0
          %2262 = vmatprep.subr.mxu0 0.0
          %2263 = vmatpush1.msra.mxu0 0.0
          %2264 = vmatprep.subr.mxu0 0.0
          %2265 = vmatpush1.msra.mxu0 0.0
          %2266 = vmatprep.subr.mxu0 0.0
          %2267 = vmatpush1.msra.mxu0 0.0
          %2268 = vmatprep.subr.mxu0 0.0
          %2269 = vmatpush1.msra.mxu0 0.0
          %2270 = vmatprep.subr.mxu0 0.0
          %2271 = vmatpush1.msra.mxu0 0.0
          %2272 = vmatprep.subr.mxu0 0.0
          %2273 = vmatpush1.msra.mxu0 0.0
          %2274 = vmatprep.mubr.f32.mxu0 0.0
          %2275 = vmatmul.mubr.f32.gmra.mrb[0].mxu0 %v2208
          %v2276 = vpop.f32.mrb[0].mxu0
          %v2277 = vadd.f32 0.0, %v2276
          %v2278 = vpop.f32.mrb[0].mxu0
          %2279 = vdwg.mxu0
          %v2280 = vadd.f32 %v2200, %v2277
          %v2281 = vld [vmem:[%s10] sm:$0x1]
          %v2283 = vlaneseq
          %v2284 = vshrl.u32 %v2283, 7
          %v2285 = vsub.s32 0, %v2284
          %v2286 = vrot.slane %v2281, %v2285
          %v2288 = vadd.f32 %v2280, %v2286
          %v2289 = vmax.f32 %v2288, 0.0
          %v2290 = vld [vmem:[#allocation11] sm:$0xff]
          %v2291 = vld [vmem:[#allocation11 + $0x8] sm:$0xff]
          %v2292 = vld [vmem:[#allocation11 + $0x10] sm:$0xff]
          %v2293 = vld [vmem:[#allocation11 + $0x18] sm:$0xff]
          %v2294 = vld [vmem:[#allocation11 + $0x20] sm:$0xff]
          %v2295 = vld [vmem:[#allocation11 + $0x28] sm:$0xff]
          %v2296 = vld [vmem:[#allocation11 + $0x30] sm:$0xff]
          %v2297 = vld [vmem:[#allocation11 + $0x38] sm:$0xff]
          %v2298 = vld [vmem:[#allocation11 + $0x40] sm:$0xff]
          %v2299 = vld [vmem:[#allocation11 + $0x48] sm:$0xff]
          %v2300 = vld [vmem:[#allocation11 + $0x50] sm:$0xff]
          %v2301 = vld [vmem:[#allocation11 + $0x58] sm:$0xff]
          %v2302 = vld [vmem:[#allocation11 + $0x60] sm:$0xff]
          %v2303 = vld [vmem:[#allocation11 + $0x68] sm:$0xff]
          %v2304 = vld [vmem:[#allocation11 + $0x70] sm:$0xff]
          %v2305 = vld [vmem:[#allocation11 + $0x78] sm:$0xff]
          %v2306 = vld [vmem:[%s12] sm:$0x1]
          %v2308 = vlaneseq
          %v2309 = vshrl.u32 %v2308, 7
          %v2310 = vsub.s32 0, %v2309
          %v2311 = vrot.slane %v2306, %v2310
          %2313 = vmatprep.subr.mxu0 0.0
          %2314 = vmatpush1.msra.mxu0 %v2290
          %2315 = vmatprep.subr.mxu0 0.0
          %2316 = vmatpush1.msra.mxu0 %v2291
          %2317 = vmatprep.subr.mxu0 0.0
          %2318 = vmatpush1.msra.mxu0 %v2292
          %2319 = vmatprep.subr.mxu0 0.0
          %2320 = vmatpush1.msra.mxu0 %v2293
          %2321 = vmatprep.subr.mxu0 0.0
          %2322 = vmatpush1.msra.mxu0 %v2294
          %2323 = vmatprep.subr.mxu0 0.0
          %2324 = vmatpush1.msra.mxu0 %v2295
          %2325 = vmatprep.subr.mxu0 0.0
          %2326 = vmatpush1.msra.mxu0 %v2296
          %2327 = vmatprep.subr.mxu0 0.0
          %2328 = vmatpush1.msra.mxu0 %v2297
          %2329 = vmatprep.subr.mxu0 0.0
          %2330 = vmatpush1.msra.mxu0 %v2298
          %2331 = vmatprep.subr.mxu0 0.0
          %2332 = vmatpush1.msra.mxu0 %v2299
          %2333 = vmatprep.subr.mxu0 0.0
          %2334 = vmatpush1.msra.mxu0 %v2300
          %2335 = vmatprep.subr.mxu0 0.0
          %2336 = vmatpush1.msra.mxu0 %v2301
          %2337 = vmatprep.subr.mxu0 0.0
          %2338 = vmatpush1.msra.mxu0 %v2302
          %2339 = vmatprep.subr.mxu0 0.0
          %2340 = vmatpush1.msra.mxu0 %v2303
          %2341 = vmatprep.subr.mxu0 0.0
          %2342 = vmatpush1.msra.mxu0 %v2304
          %2343 = vmatprep.subr.mxu0 0.0
          %2344 = vmatpush1.msra.mxu0 %v2305
          %2345 = vmatprep.subr.mxu0 0.0
          %2346 = vmatpush1.msra.mxu0 0.0
          %2347 = vmatprep.subr.mxu0 0.0
          %2348 = vmatpush1.msra.mxu0 0.0
          %2349 = vmatprep.subr.mxu0 0.0
          %2350 = vmatpush1.msra.mxu0 0.0
          %2351 = vmatprep.subr.mxu0 0.0
          %2352 = vmatpush1.msra.mxu0 0.0
          %2353 = vmatprep.subr.mxu0 0.0
          %2354 = vmatpush1.msra.mxu0 0.0
          %2355 = vmatprep.subr.mxu0 0.0
          %2356 = vmatpush1.msra.mxu0 0.0
          %2357 = vmatprep.subr.mxu0 0.0
          %2358 = vmatpush1.msra.mxu0 0.0
          %2359 = vmatprep.subr.mxu0 0.0
          %2360 = vmatpush1.msra.mxu0 0.0
          %2361 = vmatprep.subr.mxu0 0.0
          %2362 = vmatpush1.msra.mxu0 0.0
          %2363 = vmatprep.subr.mxu0 0.0
          %2364 = vmatpush1.msra.mxu0 0.0
          %2365 = vmatprep.subr.mxu0 0.0
          %2366 = vmatpush1.msra.mxu0 0.0
          %2367 = vmatprep.subr.mxu0 0.0
          %2368 = vmatpush1.msra.mxu0 0.0
          %2369 = vmatprep.subr.mxu0 0.0
          %2370 = vmatpush1.msra.mxu0 0.0
          %2371 = vmatprep.subr.mxu0 0.0
          %2372 = vmatpush1.msra.mxu0 0.0
          %2373 = vmatprep.subr.mxu0 0.0
          %2374 = vmatpush1.msra.mxu0 0.0
          %2375 = vmatprep.subr.mxu0 0.0
          %2376 = vmatpush1.msra.mxu0 0.0
          %2377 = vmatprep.mubr.f32.mxu0 0.0
          %2378 = vmatmul.mubr.f32.gmra.mrb[0].mxu0 %v2289
          %v2379 = vpop.f32.mrb[0].mxu0
          %v2380 = vadd.f32 %v2311, %v2379
          %v2381 = vpop.f32.mrb[0].mxu0
          %2382 = vdwg.mxu0
          %2383 = vst [vmem:[%s674] sm:$0xff] %v2380
        $region96: #{tpu_custom_call.1} parent=71 // pred_fallthru
          _
        %s2384 = sand.u32 %s384, 1
        %s2385 = scalar_lea.sflag [#allocation7], %s2384
        %s2386 = sand.u32 %s384, 1
        %s2387 = smul.addr %s2386, 8
        %s2388 = scalar_lea.vmem [#allocation13], %s2387
        // Predicated region
        $region97: #{tpu_custom_call.1} parent=71 // pred_check
          %p2389 = pneg %p394
        $region98: #{tpu_custom_call.1} parent=71 // pred_check_branch
          %2391 = sbr.rel (%p2389) target = $region100
        $region99: #{tpu_custom_call.1} parent=71 // pred_region
          %s2393 = ssub.s32 128, 128
          %2394 = vsyncadd %s2385, %s2393
          %s2395 = smul.addr %s38, 128
          %s2396 = scalar_lea.hbm %s13, %s2395
          %s2398 = sshll.u32 %s2388, 4
          %s2399 = int_to_ptr.vmem [resolvable:$true] %s2398
          %2401 = dma.vmem_to_hbm [thread:$0]  %s2399, 128, %s2396, %s2385
        $region100: #{tpu_custom_call.1} parent=71 // pred_fallthru
          _
      $region72: #{tpu_custom_call.1} parent=5 // pred_fallthru
        _
      %p2402 = scmp.le.s32.totalorder 2, %s29
      // Predicated region
      $region101: #{tpu_custom_call.1} parent=5 // pred_check
        %p2403 = pneg %p2402
      $region102: #{tpu_custom_call.1} parent=5 // pred_check_branch
        %2405 = sbr.rel (%p2403) target = $region104
      $region103: #{tpu_custom_call.1} parent=5 // pred_region
        %s2406 = ssub.s32 %s29, 2
        // Predicated region
        $region105: #{tpu_custom_call.1} parent=103 // pred_check
          %p2407 = pneg %p400
        $region106: #{tpu_custom_call.1} parent=103 // pred_check_branch
          %2409 = sbr.rel (%p2407) target = $region108
        $region107: #{tpu_custom_call.1} parent=103 // pred_region
          %s2410 = sand.u32 %s385, 1
          %s2411 = scalar_lea.sflag [#allocation7], %s2410
          %s2412 = sand.u32 %s385, 1
          %s2413 = smul.addr %s2412, 8
          %s2414 = scalar_lea.vmem [#allocation13], %s2413
          %2415 = dma.done %s2411, 128
        $region108: #{tpu_custom_call.1} parent=103 // pred_fallthru
          _
      $region104: #{tpu_custom_call.1} parent=5 // pred_fallthru
        _
    $region6: #{tpu_custom_call.1} parent=1 // loop_footer
      %s33 = sadd.s32 1, %s29
    $region7: #{tpu_custom_call.1} parent=1 // loop_footer_branch
      %28 = sbr.rel target = $region3
    $region8: #{tpu_custom_call.1} parent=1 // loop_exit
      _
    %2416 = vsyncpa [#allocation6], 1
    %s2417 = scalar_lea.sflag [#allocation6], 1
    %2418 = vsyncpa %s2417, 1
    %2419 = vsyncpa [#allocation9], 1
    %s2420 = scalar_lea.sflag [#allocation9], 1
    %2421 = vsyncpa %s2420, 1
    %2422 = vsyncpa [#allocation12], 1
    %2423 = vsyncpa [#allocation7], 1
    %s2424 = scalar_lea.sflag [#allocation7], 1
    %2425 = vsyncpa %s2424, 1

</llo_original>
